<compile_context>
chip_gen: v6e
topology: v6e:2x2x1
jax: 0.10.0
libtpu: 0.0.40
codegen_flags: <defaults>
</compile_context>

<pallas_src>
import jax
import jax.numpy as jnp
from jax.experimental import pallas as pl
from jax.experimental.pallas import tpu as pltpu

KT = 3          # temporal kernel size of the (k,1,1) convs and the temporal max-pool
LANE = 128      # lane width: pad all channel dims to a multiple of this


def _round_up(n, m):
  return ((n + m - 1) // m) * m


def _cdiv(a, b):
  return (a + b - 1) // b


def _vmem_budgets():
  """(vmem_limit_bytes, per-step block budget) per TPU generation."""
  cap = None
  try:
    cap = getattr(pltpu.get_tpu_info(), "vmem_capacity_bytes", None)
  except Exception:
    cap = None
  if cap is not None and int(cap) >= 128 * 1024 * 1024:
    # v5e / v6e: 128 MiB VMEM -> big tiles amortize the ~0.35us/step overhead.
    return 100 * 1024 * 1024, 48 * 1024 * 1024
  # v7x (64 MiB per TC) or unknown hardware: stay conservative.
  return 40 * 1024 * 1024, 18 * 1024 * 1024


# ----------------------------- Pallas kernel ------------------------------- #
def inception_kernel(x_ref,
                     wf_ref, bf_ref,        # fused [w0 | w1a | w2a] pointwise stage
                     w1b_ref, b1b_ref,      # branch-1 temporal conv (taps along N)
                     w2b_ref, b2b_ref,      # branch-2 temporal conv (taps along N)
                     w3_ref, b3_ref,        # branch-3 pointwise after max-pool
                     o0_ref, o1_ref, o2_ref, o3_ref):
  x = x_ref[...]                                        # (T, TILE_S, Cp)  bf16
  t, s, cp = x.shape
  cdt = x.dtype
  n0 = o0_ref.shape[-1]
  n1 = w1b_ref.shape[0]
  n2 = w2b_ref.shape[0]

  x2 = x.reshape(t * s, cp)

  # ---- fused first stage: one wide MXU push for w0 | w1a | w2a ------------- #
  yf = jnp.dot(x2, wf_ref[...], preferred_element_type=jnp.float32)
  yf = jnp.maximum(yf + bf_ref[...], 0.0)               # (t*s, n0+n1+n2)  f32

  # Branch 0: 1x1x1 -> write directly to its lane-dense output ref.
  o0_ref[...] = yf[:, :n0].reshape(t, s, n0).astype(o0_ref.dtype)

  def temporal_conv(y2d, w_ref, b_ref, out_ref):
    # (3,1,1) zero-padded conv along T as three row-shifted matmuls combined by
    # region-wise stores: no padded-input copy, no rows x 3*co intermediate,
    # and no concatenate-based shifted adds.
    co = w_ref.shape[-1] // KT
    w = w_ref[...]
    b = b_ref[...]                                       # (1, co)
    d1 = jnp.dot(y2d, w[:, co:2 * co],                   # tap uses x[t]
                 preferred_element_type=jnp.float32).reshape(t, s, co)
    d0 = jnp.dot(y2d[:(t - 1) * s], w[:, :co],           # tap uses x[t-1]
                 preferred_element_type=jnp.float32).reshape(t - 1, s, co)
    d2 = jnp.dot(y2d[s:], w[:, 2 * co:],                 # tap uses x[t+1]
                 preferred_element_type=jnp.float32).reshape(t - 1, s, co)
    out_ref[:1] = jnp.maximum(d1[:1] + d2[:1] + b, 0.0).astype(out_ref.dtype)
    out_ref[1:t - 1] = jnp.maximum(
        d1[1:t - 1] + d0[:t - 2] + d2[1:t - 1] + b, 0.0).astype(out_ref.dtype)
    out_ref[t - 1:] = jnp.maximum(
        d1[t - 1:] + d0[t - 2:] + b, 0.0).astype(out_ref.dtype)

  # Branch 1 / Branch 2: 1x1x1 (already in yf) -> (3,1,1) temporal conv.
  temporal_conv(yf[:, n0:n0 + n1].astype(cdt), w1b_ref, b1b_ref, o1_ref)
  temporal_conv(yf[:, n0 + n1:n0 + n1 + n2].astype(cdt), w2b_ref, b2b_ref, o2_ref)

  # Branch 3: zero-padded temporal max-pool (window 3, stride 1) -> 1x1x1.
  # Pool output is computed per T-region (boundary / interior) and pushed
  # straight through the MXU -- no concatenated pooled tensor.
  w3 = w3_ref[...]
  b3 = b3_ref[...]
  co3 = o3_ref.shape[-1]
  pair = jnp.maximum(x[:-1], x[1:])                      # (t-1, s, cp)

  def pool_block(m_part, out_slice):
    f = m_part.shape[0]
    y = jnp.dot(m_part.astype(cdt).reshape(f * s, cp), w3,
                preferred_element_type=jnp.float32).reshape(f, s, co3)
    o3_ref[out_slice] = jnp.maximum(y + b3, 0.0).astype(o3_ref.dtype)

  pool_block(jnp.maximum(pair[:1], 0.0), slice(0, 1))            # max(0, x0, x1)
  pool_block(jnp.maximum(pair[:t - 2], pair[1:]), slice(1, t - 1))
  pool_block(jnp.maximum(pair[t - 2:], 0.0), slice(t - 1, t))    # max(x[-2], x[-1], 0)


# --------------------------- tile-size selection ---------------------------- #
def _step_vmem_bytes(tile_s, T, cp, nf, out_widths, out_itemsize, weight_bytes):
  """Conservative per-grid-step VMEM estimate for a spatial tile of tile_s rows."""
  rows = T * tile_s
  in_b = 2 * rows * cp * 2                               # bf16 input, double-buffered
  out_b = 2 * sum(out_widths) * rows * out_itemsize      # outputs, double-buffered
  max_co = max(out_widths)
  # live intermediates: fused yf (f32), bf16 branch-input cast, per-branch
  # d0/d1/d2 + store temp (f32), pooled pair pieces (bf16)
  inter = rows * (nf * 4 + max_co * 2 + 4 * max_co * 4 + 3 * cp * 2)
  return in_b + out_b + inter + weight_bytes


def _choose_tile_s(S, T, cp, nf, out_widths, out_itemsize, weight_bytes,
                   budget_bytes, batch):
  """Largest multiple-of-8 spatial tile within the VMEM budget (S is padded to it)."""
  S8 = _round_up(max(S, 8), 8)
  tile = 8
  d = 8
  while d <= S8:
    if _step_vmem_bytes(d, T, cp, nf, out_widths, out_itemsize,
                        weight_bytes) <= budget_bytes:
      tile = d
      d += 8
    else:
      break
  # Dual-TC chips (v7x): make sure the "parallel" grid has >= 2 steps.
  if batch * _cdiv(S8, tile) < 2 and S8 >= 16:
    tile = _round_up(_cdiv(S8, 2), 8)
  return min(tile, S8)


# ------------------------------ JAX wrapper -------------------------------- #
def temporal_inception_pallas_btsc(x_btsc, kernel_params, meta,
                                   compute_dtype=jnp.bfloat16,
                                   out_dtype=jnp.float32):
  """x_btsc: (B, T, S, Cin) channels-last.  Returns (B, T, S, c_out_true)."""
  B, T, S, Cin = x_btsc.shape
  assert T >= 3, "kernel assumes T >= 3"   # TODO(synk): tiny-T fallback path
  cp = meta['cp']
  n0, n1, n2 = meta['n0'], meta['n1'], meta['n2']
  m1, m2, m3 = meta['m1'], meta['m2'], meta['m3']
  co_true = meta['co']

  x = x_btsc
  if cp != Cin:
    x = jnp.pad(x, ((0, 0), (0, 0), (0, 0), (0, cp - Cin)))
  x = x.astype(compute_dtype)

  vmem_limit, block_budget = _vmem_budgets()
  weight_bytes = 2 * sum(int(p.size) * p.dtype.itemsize for p in kernel_params)
  out_widths = (n0, m1, m2, m3)
  out_itemsize = jnp.dtype(out_dtype).itemsize
  tile_s = _choose_tile_s(S, T, cp, n0 + n1 + n2, out_widths, out_itemsize,
                          weight_bytes, block_budget, B)
  S_pad = _round_up(S, tile_s)
  if S_pad != S:
    # Spatial padding is exact: all ops are along T / channels only.
    x = jnp.pad(x, ((0, 0), (0, 0), (0, S_pad - S), (0, 0)))
  grid = (B, S_pad // tile_s)

  def full_spec(shape):
    rank = len(shape)
    return pl.BlockSpec(shape, lambda b, si, _r=rank: (0,) * _r)

  def block_spec(width):
    return pl.BlockSpec((None, T, tile_s, width), lambda b, si: (b, 0, si, 0))

  (w_fused, b_fused, w1b, b1b, w2b, b2b, w3, b3) = kernel_params

  outs = pl.pallas_call(
      inception_kernel,
      out_shape=(jax.ShapeDtypeStruct((B, T, S_pad, n0), out_dtype),
                 jax.ShapeDtypeStruct((B, T, S_pad, m1), out_dtype),
                 jax.ShapeDtypeStruct((B, T, S_pad, m2), out_dtype),
                 jax.ShapeDtypeStruct((B, T, S_pad, m3), out_dtype)),
      grid=grid,
      in_specs=[
          block_spec(cp),
          full_spec(w_fused.shape), full_spec(b_fused.shape),
          full_spec(w1b.shape), full_spec(b1b.shape),
          full_spec(w2b.shape), full_spec(b2b.shape),
          full_spec(w3.shape), full_spec(b3.shape),
      ],
      out_specs=(block_spec(n0), block_spec(m1), block_spec(m2), block_spec(m3)),
      compiler_params=pltpu.CompilerParams(
          dimension_semantics=("parallel", "parallel"),
          vmem_limit_bytes=vmem_limit),
  )(x, w_fused, b_fused, w1b, b1b, w2b, b2b, w3, b3)

  o0, o1, o2, o3 = outs
  return jnp.concatenate(
      [o0[:, :, :S, :co_true[0]], o1[:, :, :S, :co_true[1]],
       o2[:, :, :S, :co_true[2]], o3[:, :, :S, :co_true[3]]], axis=-1)


def temporal_inception_pallas(x_ncthw, kernel_params, meta):
  """PyTorch-layout entry: x (B, C, T, H, W) -> (B, c_out, T, H, W)."""
  B, Cin, T, H, W = x_ncthw.shape
  x = jnp.transpose(x_ncthw, (0, 2, 3, 4, 1)).reshape(B, T, H * W, Cin)
  y = temporal_inception_pallas_btsc(x, kernel_params, meta)
  c_out = y.shape[-1]
  return jnp.transpose(y.reshape(B, T, H, W, c_out), (0, 4, 1, 2, 3))


# ----------------------- parameter construction ---------------------------- #
def make_unit3d_params(key, in_ch, out_ch, kt, eps=1e-3):
  """Deterministic Conv3d(no bias) + BatchNorm3d params, BN folded (eval)."""
  k1, k2, k3, k4, k5 = jax.random.split(key, 5)
  w = jax.random.normal(k1, (out_ch, in_ch, kt, 1, 1), jnp.float32) * 0.1
  gamma = 1.0 + 0.1 * jax.random.normal(k2, (out_ch,), jnp.float32)
  beta = 0.1 * jax.random.normal(k3, (out_ch,), jnp.float32)
  rmean = 0.1 * jax.random.normal(k4, (out_ch,), jnp.float32)
  rvar = jnp.abs(jax.random.normal(k5, (out_ch,), jnp.float32)) + 0.5
  scale = gamma / jnp.sqrt(rvar + eps)
  w_folded = w * scale[:, None, None, None, None]          # (O, I, kt, 1, 1)
  b_folded = beta - rmean * scale                           # (O,)
  return w_folded, b_folded


def pack_kernel_params(torch_params, cin, compute_dtype=jnp.bfloat16):
  """Build lane-padded, MXU-friendly kernel layouts from folded torch params."""
  (w0, b0), (w1a, b1a), (w1b, b1b), (w2a, b2a), (w2b, b2b), (w3, b3) = torch_params
  cp = _round_up(cin, LANE)

  def pointwise(w, b, ci_pad, co_pad):
    o, i = w.shape[0], w.shape[1]
    wk = jnp.zeros((ci_pad, co_pad), jnp.float32)
    wk = wk.at[:i, :o].set(jnp.transpose(w[:, :, 0, 0, 0], (1, 0)))
    bk = jnp.zeros((1, co_pad), jnp.float32).at[0, :o].set(b)
    return wk.astype(compute_dtype), bk

  def temporal(w, b, ci_pad, co_pad):
    o, i, kt = w.shape[0], w.shape[1], w.shape[2]
    wk = jnp.zeros((ci_pad, kt * co_pad), jnp.float32)
    for dt in range(kt):                     # taps packed along the output dim
      wk = wk.at[:i, dt * co_pad:dt * co_pad + o].set(
          jnp.transpose(w[:, :, dt, 0, 0], (1, 0)))
    bk = jnp.zeros((1, co_pad), jnp.float32).at[0, :o].set(b)
    return wk.astype(compute_dtype), bk

  n0 = _round_up(w0.shape[0], LANE)
  n1 = _round_up(w1a.shape[0], LANE)
  n2 = _round_up(w2a.shape[0], LANE)
  m1 = _round_up(w1b.shape[0], LANE)
  m2 = _round_up(w2b.shape[0], LANE)
  m3 = _round_up(w3.shape[0], LANE)

  w0k, b0k = pointwise(w0, b0, cp, n0)
  w1ak, b1ak = pointwise(w1a, b1a, cp, n1)
  w2ak, b2ak = pointwise(w2a, b2a, cp, n2)
  w_fused = jnp.concatenate([w0k, w1ak, w2ak], axis=1)     # (cp, n0+n1+n2)
  b_fused = jnp.concatenate([b0k, b1ak, b2ak], axis=1)     # (1,  n0+n1+n2)

  w1bk, b1bk = temporal(w1b, b1b, n1, m1)                  # (n1, 3*m1)
  w2bk, b2bk = temporal(w2b, b2b, n2, m2)                  # (n2, 3*m2)
  w3k, b3k = pointwise(w3, b3, cp, m3)                     # (cp, m3)

  meta = dict(cp=cp, n0=n0, n1=n1, n2=n2, m1=m1, m2=m2, m3=m3,
              co=(w0.shape[0], w1b.shape[0], w2b.shape[0], w3.shape[0]))
  kernel_params = (w_fused, b_fused, w1bk, b1bk, w2bk, b2bk, w3k, b3k)
  return kernel_params, meta


# --------------------------- pure-JAX reference ----------------------------- #
def unit3d_ref(x, w, b, pad_t):
  y = jax.lax.conv_general_dilated(
      x, w, window_strides=(1, 1, 1),
      padding=((pad_t, pad_t), (0, 0), (0, 0)),
      dimension_numbers=('NCDHW', 'OIDHW', 'NCDHW'),
      precision=jax.lax.Precision.HIGHEST)
  return jnp.maximum(y + b[None, :, None, None, None], 0.0)


def reference_forward(x, torch_params):
  (w0, b0), (w1a, b1a), (w1b, b1b), (w2a, b2a), (w2b, b2b), (w3, b3) = torch_params
  y0 = unit3d_ref(x, w0, b0, 0)
  y1 = unit3d_ref(unit3d_ref(x, w1a, b1a, 0), w1b, b1b, 1)
  y2 = unit3d_ref(unit3d_ref(x, w2a, b2a, 0), w2b, b2b, 1)
  # zero-padded temporal max pool (window 3, stride 1) — matches F.pad(value=0)
  xp = jnp.pad(x, ((0, 0), (0, 0), (1, 1), (0, 0), (0, 0)))
  T = x.shape[2]
  m = jnp.maximum(jnp.maximum(xp[:, :, 0:T], xp[:, :, 1:T + 1]), xp[:, :, 2:T + 2])
  y3 = unit3d_ref(m, w3, b3, 0)
  return jnp.concatenate([y0, y1, y2, y3], axis=1)


# ---------------------------------- main ------------------------------------ #
if __name__ == "__main__":
  key = jax.random.PRNGKey(0)
  B, Cin, T, H, W = 2, 4, 8, 4, 4
  out_channels = [4, 4, 8, 4, 8, 4]   # b0, b1a, b1b, b2a, b2b, b3b

  keys = jax.random.split(key, 8)
  x = jax.random.normal(keys[0], (B, Cin, T, H, W), jnp.float32)

  tp0 = make_unit3d_params(keys[1], Cin, out_channels[0], 1)
  tp1a = make_unit3d_params(keys[2], Cin, out_channels[1], 1)
  tp1b = make_unit3d_params(keys[3], out_channels[1], out_channels[2], KT)
  tp2a = make_unit3d_params(keys[4], Cin, out_channels[3], 1)
  tp2b = make_unit3d_params(keys[5], out_channels[3], out_channels[4], KT)
  tp3 = make_unit3d_params(keys[6], Cin, out_channels[5], 1)
  torch_params = (tp0, tp1a, tp1b, tp2a, tp2b, tp3)

  kernel_params, meta = pack_kernel_params(torch_params, Cin)

  run = jax.jit(lambda xx, pp: temporal_inception_pallas(xx, pp, meta))
  out = run(x, kernel_params)
  out = jax.block_until_ready(out)

  ref = reference_forward(x, torch_params)
  assert out.shape == ref.shape, (out.shape, ref.shape)
  # bf16 matmul inputs with f32 accumulation -> loose tolerance vs f32 reference.
  assert jnp.allclose(out, ref, atol=5e-2, rtol=5e-2), \
      float(jnp.max(jnp.abs(out - ref)))

  print("KERNEL_OK")
</pallas_src>

<mosaic_0001>
module attributes {stable_mosaic.version = 11 : i64} {
  func.func @inception_kernel(%arg0: i32, %arg1: i32, %arg2: memref<1x8x16x128xbf16, #tpu.memory_space<vmem>>, %arg3: memref<128x384xbf16, #tpu.memory_space<vmem>>, %arg4: memref<1x384xf32, #tpu.memory_space<vmem>>, %arg5: memref<128x384xbf16, #tpu.memory_space<vmem>>, %arg6: memref<1x128xf32, #tpu.memory_space<vmem>>, %arg7: memref<128x384xbf16, #tpu.memory_space<vmem>>, %arg8: memref<1x128xf32, #tpu.memory_space<vmem>>, %arg9: memref<128x128xbf16, #tpu.memory_space<vmem>>, %arg10: memref<1x128xf32, #tpu.memory_space<vmem>>, %arg11: memref<1x8x16x128xf32, #tpu.memory_space<vmem>>, %arg12: memref<1x8x16x128xf32, #tpu.memory_space<vmem>>, %arg13: memref<1x8x16x128xf32, #tpu.memory_space<vmem>>, %arg14: memref<1x8x16x128xf32, #tpu.memory_space<vmem>>) attributes {dimension_semantics = [#tpu.dimension_semantics<parallel>, #tpu.dimension_semantics<parallel>], iteration_bounds = array<i64: 2, 1>, scalar_prefetch = 0 : i64, scratch_operands = 0 : i64, tpu.core_type = #tpu.core_type<tc>, window_params = [{transform_indices = @transform_0, window_bounds = array<i64: 1, 8, 16, 128>}, {pipeline_mode = #tpu.pipeline_mode<synchronous>, transform_indices = @transform_1, window_bounds = array<i64: 128, 384>}, {pipeline_mode = #tpu.pipeline_mode<synchronous>, transform_indices = @transform_2, window_bounds = array<i64: 1, 384>}, {pipeline_mode = #tpu.pipeline_mode<synchronous>, transform_indices = @transform_3, window_bounds = array<i64: 128, 384>}, {pipeline_mode = #tpu.pipeline_mode<synchronous>, transform_indices = @transform_4, window_bounds = array<i64: 1, 128>}, {pipeline_mode = #tpu.pipeline_mode<synchronous>, transform_indices = @transform_5, window_bounds = array<i64: 128, 384>}, {pipeline_mode = #tpu.pipeline_mode<synchronous>, transform_indices = @transform_6, window_bounds = array<i64: 1, 128>}, {pipeline_mode = #tpu.pipeline_mode<synchronous>, transform_indices = @transform_7, window_bounds = array<i64: 128, 128>}, {pipeline_mode = #tpu.pipeline_mode<synchronous>, transform_indices = @transform_8, window_bounds = array<i64: 1, 128>}, {transform_indices = @transform_9, window_bounds = array<i64: 1, 8, 16, 128>}, {transform_indices = @transform_10, window_bounds = array<i64: 1, 8, 16, 128>}, {transform_indices = @transform_11, window_bounds = array<i64: 1, 8, 16, 128>}, {transform_indices = @transform_12, window_bounds = array<i64: 1, 8, 16, 128>}]} {
    %c0 = arith.constant 0 : index
    %c0_0 = arith.constant 0 : index
    %c0_1 = arith.constant 0 : index
    %c0_2 = arith.constant 0 : index
    %0 = vector.load %arg2[%c0, %c0_0, %c0_1, %c0_2] : memref<1x8x16x128xbf16, #tpu.memory_space<vmem>>, vector<1x8x16x128xbf16>
    %1 = vector.shape_cast %0 : vector<1x8x16x128xbf16> to vector<8x16x128xbf16>
    %2 = vector.shape_cast %1 : vector<8x16x128xbf16> to vector<128x128xbf16>
    %c0_3 = arith.constant 0 : index
    %c0_4 = arith.constant 0 : index
    %3 = vector.load %arg3[%c0_3, %c0_4] : memref<128x384xbf16, #tpu.memory_space<vmem>>, vector<128x384xbf16>
    %cst = arith.constant dense<0.000000e+00> : vector<128x384xf32>
    %4 = tpu.matmul %2, %3, %cst {dimension_numbers = #tpu.dot_dimension_numbers<[1], [0], [0], [1], [0, 0, 1, 1], [], []>} : vector<128x128xbf16>, vector<128x384xbf16>, vector<128x384xf32> -> vector<128x384xf32>
    %c0_5 = arith.constant 0 : index
    %c0_6 = arith.constant 0 : index
    %5 = vector.load %arg4[%c0_5, %c0_6] : memref<1x384xf32, #tpu.memory_space<vmem>>, vector<1x384xf32>
    %6 = vector.broadcast %5 : vector<1x384xf32> to vector<128x384xf32>
    %7 = arith.addf %4, %6 : vector<128x384xf32>
    %cst_7 = arith.constant 0.000000e+00 : f32
    %8 = vector.broadcast %cst_7 : f32 to vector<128x384xf32>
    %9 = arith.maximumf %7, %8 : vector<128x384xf32>
    %10 = vector.extract_strided_slice %9 {offsets = [0, 0], sizes = [128, 128], strides = [1, 1]} : vector<128x384xf32> to vector<128x128xf32>
    %11 = vector.shape_cast %10 : vector<128x128xf32> to vector<8x16x128xf32>
    %c0_8 = arith.constant 0 : index
    %c0_9 = arith.constant 0 : index
    %c0_10 = arith.constant 0 : index
    %c0_11 = arith.constant 0 : index
    %12 = vector.load %arg11[%c0_8, %c0_9, %c0_10, %c0_11] : memref<1x8x16x128xf32, #tpu.memory_space<vmem>>, vector<1x8x16x128xf32>
    %13 = vector.shape_cast %12 : vector<1x8x16x128xf32> to vector<8x16x128xf32>
    %14 = vector.shape_cast %11 : vector<8x16x128xf32> to vector<1x8x16x128xf32>
    tpu.vector_store %arg11[%c0_8, %c0_9, %c0_10, %c0_11], %14 {strides = array<i32>} : memref<1x8x16x128xf32, #tpu.memory_space<vmem>>, vector<1x8x16x128xf32>,
    %15 = vector.extract_strided_slice %9 {offsets = [0, 128], sizes = [128, 128], strides = [1, 1]} : vector<128x384xf32> to vector<128x128xf32>
    %16 = arith.truncf %15 : vector<128x128xf32> to vector<128x128xbf16>
    %c0_12 = arith.constant 0 : index
    %c0_13 = arith.constant 0 : index
    %17 = vector.load %arg5[%c0_12, %c0_13] : memref<128x384xbf16, #tpu.memory_space<vmem>>, vector<128x384xbf16>
    %c0_14 = arith.constant 0 : index
    %c0_15 = arith.constant 0 : index
    %18 = vector.load %arg6[%c0_14, %c0_15] : memref<1x128xf32, #tpu.memory_space<vmem>>, vector<1x128xf32>
    %19 = vector.extract_strided_slice %17 {offsets = [0, 128], sizes = [128, 128], strides = [1, 1]} : vector<128x384xbf16> to vector<128x128xbf16>
    %cst_16 = arith.constant dense<0.000000e+00> : vector<128x128xf32>
    %20 = tpu.matmul %16, %19, %cst_16 {dimension_numbers = #tpu.dot_dimension_numbers<[1], [0], [0], [1], [0, 0, 1, 1], [], []>} : vector<128x128xbf16>, vector<128x128xbf16>, vector<128x128xf32> -> vector<128x128xf32>
    %21 = vector.shape_cast %20 : vector<128x128xf32> to vector<8x16x128xf32>
    %22 = vector.extract_strided_slice %16 {offsets = [0, 0], sizes = [112, 128], strides = [1, 1]} : vector<128x128xbf16> to vector<112x128xbf16>
    %23 = vector.extract_strided_slice %17 {offsets = [0, 0], sizes = [128, 128], strides = [1, 1]} : vector<128x384xbf16> to vector<128x128xbf16>
    %cst_17 = arith.constant dense<0.000000e+00> : vector<112x128xf32>
    %24 = tpu.matmul %22, %23, %cst_17 {dimension_numbers = #tpu.dot_dimension_numbers<[1], [0], [0], [1], [0, 0, 1, 1], [], []>} : vector<112x128xbf16>, vector<128x128xbf16>, vector<112x128xf32> -> vector<112x128xf32>
    %25 = vector.shape_cast %24 : vector<112x128xf32> to vector<7x16x128xf32>
    %26 = vector.extract_strided_slice %16 {offsets = [16, 0], sizes = [112, 128], strides = [1, 1]} : vector<128x128xbf16> to vector<112x128xbf16>
    %27 = vector.extract_strided_slice %17 {offsets = [0, 256], sizes = [128, 128], strides = [1, 1]} : vector<128x384xbf16> to vector<128x128xbf16>
    %cst_18 = arith.constant dense<0.000000e+00> : vector<112x128xf32>
    %28 = tpu.matmul %26, %27, %cst_18 {dimension_numbers = #tpu.dot_dimension_numbers<[1], [0], [0], [1], [0, 0, 1, 1], [], []>} : vector<112x128xbf16>, vector<128x128xbf16>, vector<112x128xf32> -> vector<112x128xf32>
    %29 = vector.shape_cast %28 : vector<112x128xf32> to vector<7x16x128xf32>
    %30 = vector.extract_strided_slice %21 {offsets = [0, 0, 0], sizes = [1, 16, 128], strides = [1, 1, 1]} : vector<8x16x128xf32> to vector<1x16x128xf32>
    %31 = vector.extract_strided_slice %29 {offsets = [0, 0, 0], sizes = [1, 16, 128], strides = [1, 1, 1]} : vector<7x16x128xf32> to vector<1x16x128xf32>
    %32 = arith.addf %30, %31 : vector<1x16x128xf32>
    %33 = vector.shape_cast %18 : vector<1x128xf32> to vector<1x1x128xf32>
    %34 = vector.broadcast %33 : vector<1x1x128xf32> to vector<1x16x128xf32>
    %35 = arith.addf %32, %34 : vector<1x16x128xf32>
    %cst_19 = arith.constant 0.000000e+00 : f32
    %36 = vector.broadcast %cst_19 : f32 to vector<1x16x128xf32>
    %37 = arith.maximumf %35, %36 : vector<1x16x128xf32>
    %c0_20 = arith.constant 0 : index
    %c0_21 = arith.constant 0 : index
    %c0_22 = arith.constant 0 : index
    %c0_23 = arith.constant 0 : index
    %38 = vector.load %arg12[%c0_20, %c0_21, %c0_22, %c0_23] : memref<1x8x16x128xf32, #tpu.memory_space<vmem>>, vector<1x1x16x128xf32>
    %39 = vector.shape_cast %38 : vector<1x1x16x128xf32> to vector<1x16x128xf32>
    %40 = vector.shape_cast %37 : vector<1x16x128xf32> to vector<1x1x16x128xf32>
    tpu.vector_store %arg12[%c0_20, %c0_21, %c0_22, %c0_23], %40 {strides = array<i32>} : memref<1x8x16x128xf32, #tpu.memory_space<vmem>>, vector<1x1x16x128xf32>,
    %41 = vector.extract_strided_slice %21 {offsets = [1, 0, 0], sizes = [6, 16, 128], strides = [1, 1, 1]} : vector<8x16x128xf32> to vector<6x16x128xf32>
    %42 = vector.extract_strided_slice %25 {offsets = [0, 0, 0], sizes = [6, 16, 128], strides = [1, 1, 1]} : vector<7x16x128xf32> to vector<6x16x128xf32>
    %43 = arith.addf %41, %42 : vector<6x16x128xf32>
    %44 = vector.extract_strided_slice %29 {offsets = [1, 0, 0], sizes = [6, 16, 128], strides = [1, 1, 1]} : vector<7x16x128xf32> to vector<6x16x128xf32>
    %45 = arith.addf %43, %44 : vector<6x16x128xf32>
    %46 = vector.shape_cast %18 : vector<1x128xf32> to vector<1x1x128xf32>
    %47 = vector.broadcast %46 : vector<1x1x128xf32> to vector<6x16x128xf32>
    %48 = arith.addf %45, %47 : vector<6x16x128xf32>
    %cst_24 = arith.constant 0.000000e+00 : f32
    %49 = vector.broadcast %cst_24 : f32 to vector<6x16x128xf32>
    %50 = arith.maximumf %48, %49 : vector<6x16x128xf32>
    %c0_25 = arith.constant 0 : index
    %c1 = arith.constant 1 : index
    %c0_26 = arith.constant 0 : index
    %c0_27 = arith.constant 0 : index
    %51 = vector.load %arg12[%c0_25, %c1, %c0_26, %c0_27] : memref<1x8x16x128xf32, #tpu.memory_space<vmem>>, vector<1x6x16x128xf32>
    %52 = vector.shape_cast %51 : vector<1x6x16x128xf32> to vector<6x16x128xf32>
    %53 = vector.shape_cast %50 : vector<6x16x128xf32> to vector<1x6x16x128xf32>
    tpu.vector_store %arg12[%c0_25, %c1, %c0_26, %c0_27], %53 {strides = array<i32>} : memref<1x8x16x128xf32, #tpu.memory_space<vmem>>, vector<1x6x16x128xf32>,
    %54 = vector.extract_strided_slice %21 {offsets = [7, 0, 0], sizes = [1, 16, 128], strides = [1, 1, 1]} : vector<8x16x128xf32> to vector<1x16x128xf32>
    %55 = vector.extract_strided_slice %25 {offsets = [6, 0, 0], sizes = [1, 16, 128], strides = [1, 1, 1]} : vector<7x16x128xf32> to vector<1x16x128xf32>
    %56 = arith.addf %54, %55 : vector<1x16x128xf32>
    %57 = vector.shape_cast %18 : vector<1x128xf32> to vector<1x1x128xf32>
    %58 = vector.broadcast %57 : vector<1x1x128xf32> to vector<1x16x128xf32>
    %59 = arith.addf %56, %58 : vector<1x16x128xf32>
    %cst_28 = arith.constant 0.000000e+00 : f32
    %60 = vector.broadcast %cst_28 : f32 to vector<1x16x128xf32>
    %61 = arith.maximumf %59, %60 : vector<1x16x128xf32>
    %c0_29 = arith.constant 0 : index
    %c7 = arith.constant 7 : index
    %c0_30 = arith.constant 0 : index
    %c0_31 = arith.constant 0 : index
    %62 = vector.load %arg12[%c0_29, %c7, %c0_30, %c0_31] : memref<1x8x16x128xf32, #tpu.memory_space<vmem>>, vector<1x1x16x128xf32>
    %63 = vector.shape_cast %62 : vector<1x1x16x128xf32> to vector<1x16x128xf32>
    %64 = vector.shape_cast %61 : vector<1x16x128xf32> to vector<1x1x16x128xf32>
    tpu.vector_store %arg12[%c0_29, %c7, %c0_30, %c0_31], %64 {strides = array<i32>} : memref<1x8x16x128xf32, #tpu.memory_space<vmem>>, vector<1x1x16x128xf32>,
    %65 = vector.extract_strided_slice %9 {offsets = [0, 256], sizes = [128, 128], strides = [1, 1]} : vector<128x384xf32> to vector<128x128xf32>
    %66 = arith.truncf %65 : vector<128x128xf32> to vector<128x128xbf16>
    %c0_32 = arith.constant 0 : index
    %c0_33 = arith.constant 0 : index
    %67 = vector.load %arg7[%c0_32, %c0_33] : memref<128x384xbf16, #tpu.memory_space<vmem>>, vector<128x384xbf16>
    %c0_34 = arith.constant 0 : index
    %c0_35 = arith.constant 0 : index
    %68 = vector.load %arg8[%c0_34, %c0_35] : memref<1x128xf32, #tpu.memory_space<vmem>>, vector<1x128xf32>
    %69 = vector.extract_strided_slice %67 {offsets = [0, 128], sizes = [128, 128], strides = [1, 1]} : vector<128x384xbf16> to vector<128x128xbf16>
    %cst_36 = arith.constant dense<0.000000e+00> : vector<128x128xf32>
    %70 = tpu.matmul %66, %69, %cst_36 {dimension_numbers = #tpu.dot_dimension_numbers<[1], [0], [0], [1], [0, 0, 1, 1], [], []>} : vector<128x128xbf16>, vector<128x128xbf16>, vector<128x128xf32> -> vector<128x128xf32>
    %71 = vector.shape_cast %70 : vector<128x128xf32> to vector<8x16x128xf32>
    %72 = vector.extract_strided_slice %66 {offsets = [0, 0], sizes = [112, 128], strides = [1, 1]} : vector<128x128xbf16> to vector<112x128xbf16>
    %73 = vector.extract_strided_slice %67 {offsets = [0, 0], sizes = [128, 128], strides = [1, 1]} : vector<128x384xbf16> to vector<128x128xbf16>
    %cst_37 = arith.constant dense<0.000000e+00> : vector<112x128xf32>
    %74 = tpu.matmul %72, %73, %cst_37 {dimension_numbers = #tpu.dot_dimension_numbers<[1], [0], [0], [1], [0, 0, 1, 1], [], []>} : vector<112x128xbf16>, vector<128x128xbf16>, vector<112x128xf32> -> vector<112x128xf32>
    %75 = vector.shape_cast %74 : vector<112x128xf32> to vector<7x16x128xf32>
    %76 = vector.extract_strided_slice %66 {offsets = [16, 0], sizes = [112, 128], strides = [1, 1]} : vector<128x128xbf16> to vector<112x128xbf16>
    %77 = vector.extract_strided_slice %67 {offsets = [0, 256], sizes = [128, 128], strides = [1, 1]} : vector<128x384xbf16> to vector<128x128xbf16>
    %cst_38 = arith.constant dense<0.000000e+00> : vector<112x128xf32>
    %78 = tpu.matmul %76, %77, %cst_38 {dimension_numbers = #tpu.dot_dimension_numbers<[1], [0], [0], [1], [0, 0, 1, 1], [], []>} : vector<112x128xbf16>, vector<128x128xbf16>, vector<112x128xf32> -> vector<112x128xf32>
    %79 = vector.shape_cast %78 : vector<112x128xf32> to vector<7x16x128xf32>
    %80 = vector.extract_strided_slice %71 {offsets = [0, 0, 0], sizes = [1, 16, 128], strides = [1, 1, 1]} : vector<8x16x128xf32> to vector<1x16x128xf32>
    %81 = vector.extract_strided_slice %79 {offsets = [0, 0, 0], sizes = [1, 16, 128], strides = [1, 1, 1]} : vector<7x16x128xf32> to vector<1x16x128xf32>
    %82 = arith.addf %80, %81 : vector<1x16x128xf32>
    %83 = vector.shape_cast %68 : vector<1x128xf32> to vector<1x1x128xf32>
    %84 = vector.broadcast %83 : vector<1x1x128xf32> to vector<1x16x128xf32>
    %85 = arith.addf %82, %84 : vector<1x16x128xf32>
    %cst_39 = arith.constant 0.000000e+00 : f32
    %86 = vector.broadcast %cst_39 : f32 to vector<1x16x128xf32>
    %87 = arith.maximumf %85, %86 : vector<1x16x128xf32>
    %c0_40 = arith.constant 0 : index
    %c0_41 = arith.constant 0 : index
    %c0_42 = arith.constant 0 : index
    %c0_43 = arith.constant 0 : index
    %88 = vector.load %arg13[%c0_40, %c0_41, %c0_42, %c0_43] : memref<1x8x16x128xf32, #tpu.memory_space<vmem>>, vector<1x1x16x128xf32>
    %89 = vector.shape_cast %88 : vector<1x1x16x128xf32> to vector<1x16x128xf32>
    %90 = vector.shape_cast %87 : vector<1x16x128xf32> to vector<1x1x16x128xf32>
    tpu.vector_store %arg13[%c0_40, %c0_41, %c0_42, %c0_43], %90 {strides = array<i32>} : memref<1x8x16x128xf32, #tpu.memory_space<vmem>>, vector<1x1x16x128xf32>,
    %91 = vector.extract_strided_slice %71 {offsets = [1, 0, 0], sizes = [6, 16, 128], strides = [1, 1, 1]} : vector<8x16x128xf32> to vector<6x16x128xf32>
    %92 = vector.extract_strided_slice %75 {offsets = [0, 0, 0], sizes = [6, 16, 128], strides = [1, 1, 1]} : vector<7x16x128xf32> to vector<6x16x128xf32>
    %93 = arith.addf %91, %92 : vector<6x16x128xf32>
    %94 = vector.extract_strided_slice %79 {offsets = [1, 0, 0], sizes = [6, 16, 128], strides = [1, 1, 1]} : vector<7x16x128xf32> to vector<6x16x128xf32>
    %95 = arith.addf %93, %94 : vector<6x16x128xf32>
    %96 = vector.shape_cast %68 : vector<1x128xf32> to vector<1x1x128xf32>
    %97 = vector.broadcast %96 : vector<1x1x128xf32> to vector<6x16x128xf32>
    %98 = arith.addf %95, %97 : vector<6x16x128xf32>
    %cst_44 = arith.constant 0.000000e+00 : f32
    %99 = vector.broadcast %cst_44 : f32 to vector<6x16x128xf32>
    %100 = arith.maximumf %98, %99 : vector<6x16x128xf32>
    %c0_45 = arith.constant 0 : index
    %c1_46 = arith.constant 1 : index
    %c0_47 = arith.constant 0 : index
    %c0_48 = arith.constant 0 : index
    %101 = vector.load %arg13[%c0_45, %c1_46, %c0_47, %c0_48] : memref<1x8x16x128xf32, #tpu.memory_space<vmem>>, vector<1x6x16x128xf32>
    %102 = vector.shape_cast %101 : vector<1x6x16x128xf32> to vector<6x16x128xf32>
    %103 = vector.shape_cast %100 : vector<6x16x128xf32> to vector<1x6x16x128xf32>
    tpu.vector_store %arg13[%c0_45, %c1_46, %c0_47, %c0_48], %103 {strides = array<i32>} : memref<1x8x16x128xf32, #tpu.memory_space<vmem>>, vector<1x6x16x128xf32>,
    %104 = vector.extract_strided_slice %71 {offsets = [7, 0, 0], sizes = [1, 16, 128], strides = [1, 1, 1]} : vector<8x16x128xf32> to vector<1x16x128xf32>
    %105 = vector.extract_strided_slice %75 {offsets = [6, 0, 0], sizes = [1, 16, 128], strides = [1, 1, 1]} : vector<7x16x128xf32> to vector<1x16x128xf32>
    %106 = arith.addf %104, %105 : vector<1x16x128xf32>
    %107 = vector.shape_cast %68 : vector<1x128xf32> to vector<1x1x128xf32>
    %108 = vector.broadcast %107 : vector<1x1x128xf32> to vector<1x16x128xf32>
    %109 = arith.addf %106, %108 : vector<1x16x128xf32>
    %cst_49 = arith.constant 0.000000e+00 : f32
    %110 = vector.broadcast %cst_49 : f32 to vector<1x16x128xf32>
    %111 = arith.maximumf %109, %110 : vector<1x16x128xf32>
    %c0_50 = arith.constant 0 : index
    %c7_51 = arith.constant 7 : index
    %c0_52 = arith.constant 0 : index
    %c0_53 = arith.constant 0 : index
    %112 = vector.load %arg13[%c0_50, %c7_51, %c0_52, %c0_53] : memref<1x8x16x128xf32, #tpu.memory_space<vmem>>, vector<1x1x16x128xf32>
    %113 = vector.shape_cast %112 : vector<1x1x16x128xf32> to vector<1x16x128xf32>
    %114 = vector.shape_cast %111 : vector<1x16x128xf32> to vector<1x1x16x128xf32>
    tpu.vector_store %arg13[%c0_50, %c7_51, %c0_52, %c0_53], %114 {strides = array<i32>} : memref<1x8x16x128xf32, #tpu.memory_space<vmem>>, vector<1x1x16x128xf32>,
    %c0_54 = arith.constant 0 : index
    %c0_55 = arith.constant 0 : index
    %115 = vector.load %arg9[%c0_54, %c0_55] : memref<128x128xbf16, #tpu.memory_space<vmem>>, vector<128x128xbf16>
    %c0_56 = arith.constant 0 : index
    %c0_57 = arith.constant 0 : index
    %116 = vector.load %arg10[%c0_56, %c0_57] : memref<1x128xf32, #tpu.memory_space<vmem>>, vector<1x128xf32>
    %117 = vector.extract_strided_slice %1 {offsets = [0, 0, 0], sizes = [7, 16, 128], strides = [1, 1, 1]} : vector<8x16x128xbf16> to vector<7x16x128xbf16>
    %118 = vector.extract_strided_slice %1 {offsets = [1, 0, 0], sizes = [7, 16, 128], strides = [1, 1, 1]} : vector<8x16x128xbf16> to vector<7x16x128xbf16>
    %119 = arith.maximumf %117, %118 : vector<7x16x128xbf16>
    %120 = vector.extract_strided_slice %119 {offsets = [0, 0, 0], sizes = [1, 16, 128], strides = [1, 1, 1]} : vector<7x16x128xbf16> to vector<1x16x128xbf16>
    %cst_58 = arith.constant 0.000000e+00 : bf16
    %121 = vector.broadcast %cst_58 : bf16 to vector<1x16x128xbf16>
    %122 = arith.maximumf %120, %121 : vector<1x16x128xbf16>
    %123 = vector.shape_cast %122 : vector<1x16x128xbf16> to vector<16x128xbf16>
    %cst_59 = arith.constant dense<0.000000e+00> : vector<16x128xf32>
    %124 = tpu.matmul %123, %115, %cst_59 {dimension_numbers = #tpu.dot_dimension_numbers<[1], [0], [0], [1], [0, 0, 1, 1], [], []>} : vector<16x128xbf16>, vector<128x128xbf16>, vector<16x128xf32> -> vector<16x128xf32>
    %125 = vector.shape_cast %124 : vector<16x128xf32> to vector<1x16x128xf32>
    %126 = vector.shape_cast %116 : vector<1x128xf32> to vector<1x1x128xf32>
    %127 = vector.broadcast %126 : vector<1x1x128xf32> to vector<1x16x128xf32>
    %128 = arith.addf %125, %127 : vector<1x16x128xf32>
    %cst_60 = arith.constant 0.000000e+00 : f32
    %129 = vector.broadcast %cst_60 : f32 to vector<1x16x128xf32>
    %130 = arith.maximumf %128, %129 : vector<1x16x128xf32>
    %c0_61 = arith.constant 0 : index
    %c0_62 = arith.constant 0 : index
    %c0_63 = arith.constant 0 : index
    %c0_64 = arith.constant 0 : index
    %131 = vector.load %arg14[%c0_61, %c0_62, %c0_63, %c0_64] : memref<1x8x16x128xf32, #tpu.memory_space<vmem>>, vector<1x1x16x128xf32>
    %132 = vector.shape_cast %131 : vector<1x1x16x128xf32> to vector<1x16x128xf32>
    %133 = vector.shape_cast %130 : vector<1x16x128xf32> to vector<1x1x16x128xf32>
    tpu.vector_store %arg14[%c0_61, %c0_62, %c0_63, %c0_64], %133 {strides = array<i32>} : memref<1x8x16x128xf32, #tpu.memory_space<vmem>>, vector<1x1x16x128xf32>,
    %134 = vector.extract_strided_slice %119 {offsets = [0, 0, 0], sizes = [6, 16, 128], strides = [1, 1, 1]} : vector<7x16x128xbf16> to vector<6x16x128xbf16>
    %135 = vector.extract_strided_slice %119 {offsets = [1, 0, 0], sizes = [6, 16, 128], strides = [1, 1, 1]} : vector<7x16x128xbf16> to vector<6x16x128xbf16>
    %136 = arith.maximumf %134, %135 : vector<6x16x128xbf16>
    %137 = vector.shape_cast %136 : vector<6x16x128xbf16> to vector<96x128xbf16>
    %cst_65 = arith.constant dense<0.000000e+00> : vector<96x128xf32>
    %138 = tpu.matmul %137, %115, %cst_65 {dimension_numbers = #tpu.dot_dimension_numbers<[1], [0], [0], [1], [0, 0, 1, 1], [], []>} : vector<96x128xbf16>, vector<128x128xbf16>, vector<96x128xf32> -> vector<96x128xf32>
    %139 = vector.shape_cast %138 : vector<96x128xf32> to vector<6x16x128xf32>
    %140 = vector.shape_cast %116 : vector<1x128xf32> to vector<1x1x128xf32>
    %141 = vector.broadcast %140 : vector<1x1x128xf32> to vector<6x16x128xf32>
    %142 = arith.addf %139, %141 : vector<6x16x128xf32>
    %cst_66 = arith.constant 0.000000e+00 : f32
    %143 = vector.broadcast %cst_66 : f32 to vector<6x16x128xf32>
    %144 = arith.maximumf %142, %143 : vector<6x16x128xf32>
    %c0_67 = arith.constant 0 : index
    %c1_68 = arith.constant 1 : index
    %c0_69 = arith.constant 0 : index
    %c0_70 = arith.constant 0 : index
    %145 = vector.load %arg14[%c0_67, %c1_68, %c0_69, %c0_70] : memref<1x8x16x128xf32, #tpu.memory_space<vmem>>, vector<1x6x16x128xf32>
    %146 = vector.shape_cast %145 : vector<1x6x16x128xf32> to vector<6x16x128xf32>
    %147 = vector.shape_cast %144 : vector<6x16x128xf32> to vector<1x6x16x128xf32>
    tpu.vector_store %arg14[%c0_67, %c1_68, %c0_69, %c0_70], %147 {strides = array<i32>} : memref<1x8x16x128xf32, #tpu.memory_space<vmem>>, vector<1x6x16x128xf32>,
    %148 = vector.extract_strided_slice %119 {offsets = [6, 0, 0], sizes = [1, 16, 128], strides = [1, 1, 1]} : vector<7x16x128xbf16> to vector<1x16x128xbf16>
    %cst_71 = arith.constant 0.000000e+00 : bf16
    %149 = vector.broadcast %cst_71 : bf16 to vector<1x16x128xbf16>
    %150 = arith.maximumf %148, %149 : vector<1x16x128xbf16>
    %151 = vector.shape_cast %150 : vector<1x16x128xbf16> to vector<16x128xbf16>
    %cst_72 = arith.constant dense<0.000000e+00> : vector<16x128xf32>
    %152 = tpu.matmul %151, %115, %cst_72 {dimension_numbers = #tpu.dot_dimension_numbers<[1], [0], [0], [1], [0, 0, 1, 1], [], []>} : vector<16x128xbf16>, vector<128x128xbf16>, vector<16x128xf32> -> vector<16x128xf32>
    %153 = vector.shape_cast %152 : vector<16x128xf32> to vector<1x16x128xf32>
    %154 = vector.shape_cast %116 : vector<1x128xf32> to vector<1x1x128xf32>
    %155 = vector.broadcast %154 : vector<1x1x128xf32> to vector<1x16x128xf32>
    %156 = arith.addf %153, %155 : vector<1x16x128xf32>
    %cst_73 = arith.constant 0.000000e+00 : f32
    %157 = vector.broadcast %cst_73 : f32 to vector<1x16x128xf32>
    %158 = arith.maximumf %156, %157 : vector<1x16x128xf32>
    %c0_74 = arith.constant 0 : index
    %c7_75 = arith.constant 7 : index
    %c0_76 = arith.constant 0 : index
    %c0_77 = arith.constant 0 : index
    %159 = vector.load %arg14[%c0_74, %c7_75, %c0_76, %c0_77] : memref<1x8x16x128xf32, #tpu.memory_space<vmem>>, vector<1x1x16x128xf32>
    %160 = vector.shape_cast %159 : vector<1x1x16x128xf32> to vector<1x16x128xf32>
    %161 = vector.shape_cast %158 : vector<1x16x128xf32> to vector<1x1x16x128xf32>
    tpu.vector_store %arg14[%c0_74, %c7_75, %c0_76, %c0_77], %161 {strides = array<i32>} : memref<1x8x16x128xf32, #tpu.memory_space<vmem>>, vector<1x1x16x128xf32>,
    return
  }
  func.func @transform_0(%arg0: i32, %arg1: i32) -> (i32, i32, i32, i32) {
    %c0_i32 = arith.constant 0 : i32
    %c0_i32_0 = arith.constant 0 : i32
    %c0_i32_1 = arith.constant 0 : i32
    return %arg0, %c0_i32, %arg1, %c0_i32_0 : i32, i32, i32, i32
  }
  func.func @transform_1(%arg0: i32, %arg1: i32) -> (i32, i32) {
    %c0_i32 = arith.constant 0 : i32
    %c0_i32_0 = arith.constant 0 : i32
    %c0_i32_1 = arith.constant 0 : i32
    return %c0_i32, %c0_i32_0 : i32, i32
  }
  func.func @transform_2(%arg0: i32, %arg1: i32) -> (i32, i32) {
    %c0_i32 = arith.constant 0 : i32
    %c0_i32_0 = arith.constant 0 : i32
    %c0_i32_1 = arith.constant 0 : i32
    return %c0_i32, %c0_i32_0 : i32, i32
  }
  func.func @transform_3(%arg0: i32, %arg1: i32) -> (i32, i32) {
    %c0_i32 = arith.constant 0 : i32
    %c0_i32_0 = arith.constant 0 : i32
    %c0_i32_1 = arith.constant 0 : i32
    return %c0_i32, %c0_i32_0 : i32, i32
  }
  func.func @transform_4(%arg0: i32, %arg1: i32) -> (i32, i32) {
    %c0_i32 = arith.constant 0 : i32
    %c0_i32_0 = arith.constant 0 : i32
    %c0_i32_1 = arith.constant 0 : i32
    return %c0_i32, %c0_i32_0 : i32, i32
  }
  func.func @transform_5(%arg0: i32, %arg1: i32) -> (i32, i32) {
    %c0_i32 = arith.constant 0 : i32
    %c0_i32_0 = arith.constant 0 : i32
    %c0_i32_1 = arith.constant 0 : i32
    return %c0_i32, %c0_i32_0 : i32, i32
  }
  func.func @transform_6(%arg0: i32, %arg1: i32) -> (i32, i32) {
    %c0_i32 = arith.constant 0 : i32
    %c0_i32_0 = arith.constant 0 : i32
    %c0_i32_1 = arith.constant 0 : i32
    return %c0_i32, %c0_i32_0 : i32, i32
  }
  func.func @transform_7(%arg0: i32, %arg1: i32) -> (i32, i32) {
    %c0_i32 = arith.constant 0 : i32
    %c0_i32_0 = arith.constant 0 : i32
    %c0_i32_1 = arith.constant 0 : i32
    return %c0_i32, %c0_i32_0 : i32, i32
  }
  func.func @transform_8(%arg0: i32, %arg1: i32) -> (i32, i32) {
    %c0_i32 = arith.constant 0 : i32
    %c0_i32_0 = arith.constant 0 : i32
    %c0_i32_1 = arith.constant 0 : i32
    return %c0_i32, %c0_i32_0 : i32, i32
  }
  func.func @transform_9(%arg0: i32, %arg1: i32) -> (i32, i32, i32, i32) {
    %c0_i32 = arith.constant 0 : i32
    %c0_i32_0 = arith.constant 0 : i32
    %c0_i32_1 = arith.constant 0 : i32
    return %arg0, %c0_i32, %arg1, %c0_i32_0 : i32, i32, i32, i32
  }
  func.func @transform_10(%arg0: i32, %arg1: i32) -> (i32, i32, i32, i32) {
    %c0_i32 = arith.constant 0 : i32
    %c0_i32_0 = arith.constant 0 : i32
    %c0_i32_1 = arith.constant 0 : i32
    return %arg0, %c0_i32, %arg1, %c0_i32_0 : i32, i32, i32, i32
  }
  func.func @transform_11(%arg0: i32, %arg1: i32) -> (i32, i32, i32, i32) {
    %c0_i32 = arith.constant 0 : i32
    %c0_i32_0 = arith.constant 0 : i32
    %c0_i32_1 = arith.constant 0 : i32
    return %arg0, %c0_i32, %arg1, %c0_i32_0 : i32, i32, i32, i32
  }
  func.func @transform_12(%arg0: i32, %arg1: i32) -> (i32, i32, i32, i32) {
    %c0_i32 = arith.constant 0 : i32
    %c0_i32_0 = arith.constant 0 : i32
    %c0_i32_1 = arith.constant 0 : i32
    return %arg0, %c0_i32, %arg1, %c0_i32_0 : i32, i32, i32, i32
  }
}

</mosaic_0001>

<llo_original>
// kernel: _lambda_.1
$region0: #{_lambda_.1}
  #allocation0 [shape = 'u32[]', space=smem, size = 0x4, offset = 0x4, fixed_abs, tag = 'smem constant byte address 0x4 - core index']
  #allocation1 [shape = 'u32[144,128]{1,0:T(1,128)}', space=vmem, size = 0x12000, scoped, tag = 'internal scratch']
  %s0 = inlined_call_operand.vmem [shape: bf16[2,8,16,128], index: 0, kind: input, shape index: {}]
  %s1 = inlined_call_operand.vmem [shape: bf16[128,384], index: 1, kind: input, shape index: {}]
  %s2 = inlined_call_operand.hbm [shape: f32[1,384], index: 2, kind: input, shape index: {}]
  %s3 = inlined_call_operand.vmem [shape: bf16[128,384], index: 3, kind: input, shape index: {}]
  %s4 = inlined_call_operand.vmem [shape: f32[1,128], index: 4, kind: input, shape index: {}]
  %s5 = inlined_call_operand.vmem [shape: bf16[128,384], index: 5, kind: input, shape index: {}]
  %s6 = inlined_call_operand.vmem [shape: f32[1,128], index: 6, kind: input, shape index: {}]
  %s7 = inlined_call_operand.vmem [shape: bf16[128,128], index: 7, kind: input, shape index: {}]
  %s8 = inlined_call_operand.vmem [shape: f32[1,128], index: 8, kind: input, shape index: {}]
  %s9 = inlined_call_operand.vmem [shape: f32[2,8,16,128], index: 9, kind: output, shape index: {0}]
  %s10 = inlined_call_operand.vmem [shape: f32[2,8,16,128], index: 10, kind: output, shape index: {1}]
  %s11 = inlined_call_operand.vmem [shape: f32[2,8,16,128], index: 11, kind: output, shape index: {2}]
  %s12 = inlined_call_operand.vmem [shape: f32[2,8,16,128], index: 12, kind: output, shape index: {3}]
  %13 = xla_tuple %s9, %s10, %s11, %s12
  %s14 = sld [smem:[#allocation0]]
  $region97: #{_lambda_.1} parent=0
    _
  %s16 = ssub.s32 1, %s14
  %s17 = scalar_select 0, %s16, %s14
  $region1: #{_lambda_.1} parent=0
    #allocation2 [shape = 'u8[1536]{0}', space=vmem, size = 0x800, scoped, tag = 'input window, operand 2, single buffered']
    #allocation3 [shape = 's32[2]{0}', space=sflag, size = 0x8, scoped, tag = 'scoped memory for _lambda_.1']
    %18 = vsyncpa [#allocation3], 0
    loop: start=0, step=1, limit=4
    $region2: #{_lambda_.1} parent=1 // loop_pre_header
      _
    $region3: #{_lambda_.1} parent=1 // loop_header
      %s20 = sphi 0, %s24
      %p21 = scmp.ge.s32.totalorder %s20, 4
      %s27 = sphi 0, %s39
      %s28 = sphi 0, %s35
      %s29 = sphi 0, %s27
      %s30 = sphi 0, %s28
      %s31 = sphi 0, %s29
      %s32 = sphi 0, %s30
      %s44 = sphi 0, %s46
      %s47 = sphi 0, %s44
      %s48 = sphi 0, %s47
      %s64 = sphi 0, %s48
      %s68 = sphi 0, %s68
      %s70 = sphi 0, %s68
      %s71 = sphi 0, %s70
      %s85 = sphi 0, %s71
      %s89 = sphi 0, %s89
      %s91 = sphi 0, %s89
      %s92 = sphi 0, %s91
      %s106 = sphi 0, %s92
      %s110 = sphi 0, %s110
      %s112 = sphi 0, %s110
      %s113 = sphi 0, %s112
      %s127 = sphi 0, %s113
      %s131 = sphi 0, %s131
      %s133 = sphi 0, %s131
      %s134 = sphi 0, %s133
      %s148 = sphi 0, %s134
      %s152 = sphi 0, %s152
      %s154 = sphi 0, %s152
      %s155 = sphi 0, %s154
      %s169 = sphi 0, %s155
      %s173 = sphi 0, %s173
      %s175 = sphi 0, %s173
      %s176 = sphi 0, %s175
      %s190 = sphi 0, %s176
      %s194 = sphi 0, %s194
      %s196 = sphi 0, %s194
      %s197 = sphi 0, %s196
      %s211 = sphi 0, %s197
      %s215 = sphi 0, %s215
      %s217 = sphi 0, %s215
      %s218 = sphi 0, %s217
      %s232 = sphi 0, %s218
      %s240 = sphi 0, %s242
      %s243 = sphi 0, %s240
      %s244 = sphi 0, %s243
      %s260 = sphi 0, %s244
      %s268 = sphi 0, %s270
      %s271 = sphi 0, %s268
      %s272 = sphi 0, %s271
      %s288 = sphi 0, %s272
      %s296 = sphi 0, %s298
      %s299 = sphi 0, %s296
      %s300 = sphi 0, %s299
      %s316 = sphi 0, %s300
      %s324 = sphi 0, %s326
      %s327 = sphi 0, %s324
      %s328 = sphi 0, %s327
      %s344 = sphi 0, %s328
    $region4: #{_lambda_.1} parent=1 // loop_header_branch
      %23 = sbr.rel (%p21) target = $region8
    $region5: #{_lambda_.1} parent=1 // loop_body
      %s25 = ssub.s32 %s20, 1
      %s26 = ssub.s32 %s20, 2
      %s33 = sadd.s32 1, %s28
      %p34 = scmp.ge.s32.totalorder %s33, 1
      %s35 = scalar_select %p34, 0, %s33
      %s36 = sadd.s32 1, %s27
      %s37 = scalar_select %p34, %s36, %s27
      %p38 = scmp.ge.s32.totalorder %s37, 2
      %s39 = scalar_select %p38, 0, %s37
      %s40 = ssub.s32 %s27, %s39
      %s41 = ssub.s32 %s28, %s35
      %s42 = sor.u32 %s40, %s41
      %p43 = scmp.eq.s32.totalorder %s42, 0
      %s45 = sadd.s32 %s44, 1
      %s46 = scalar_select %p43, %s44, %s45
      %p49 = pneg %p43
      %p50 = scmp.eq.s32.totalorder %s20, 1
      %p51 = por %p49, %p50
      %p52 = scmp.ne.s32.totalorder %s44, %s47
      %p53 = scmp.eq.s32.totalorder %s20, 0
      %p54 = por %p52, %p53
      %p55 = scmp.ne.s32.totalorder %s44, %s47
      %p56 = scmp.eq.s32.totalorder %s25, 1
      %p57 = por %p55, %p56
      %p58 = scmp.ne.s32.totalorder %s47, %s48
      %p59 = scmp.eq.s32.totalorder %s25, 0
      %p60 = por %p58, %p59
      %p61 = scmp.ne.s32.totalorder %s47, %s48
      %p62 = scmp.eq.s32.totalorder %s26, 1
      %p63 = por %p61, %p62
      %p65 = scmp.ne.s32.totalorder %s48, %s64
      %p66 = scmp.eq.s32.totalorder %s26, 0
      %p67 = por %p65, %p66
      %s69 = sadd.s32 %s68, 1
      %p72 = scmp.eq.s32.totalorder %s20, 1
      %p73 = scmp.ne.s32.totalorder %s68, %s70
      %p74 = scmp.eq.s32.totalorder %s20, 0
      %p75 = por %p73, %p74
      %p76 = scmp.ne.s32.totalorder %s68, %s70
      %p77 = scmp.eq.s32.totalorder %s25, 1
      %p78 = por %p76, %p77
      %p79 = scmp.ne.s32.totalorder %s70, %s71
      %p80 = scmp.eq.s32.totalorder %s25, 0
      %p81 = por %p79, %p80
      %p82 = scmp.ne.s32.totalorder %s70, %s71
      %p83 = scmp.eq.s32.totalorder %s26, 1
      %p84 = por %p82, %p83
      %p86 = scmp.ne.s32.totalorder %s71, %s85
      %p87 = scmp.eq.s32.totalorder %s26, 0
      %p88 = por %p86, %p87
      %s90 = sadd.s32 %s89, 1
      %p93 = scmp.eq.s32.totalorder %s20, 1
      %p94 = scmp.ne.s32.totalorder %s89, %s91
      %p95 = scmp.eq.s32.totalorder %s20, 0
      %p96 = por %p94, %p95
      %p97 = scmp.ne.s32.totalorder %s89, %s91
      %p98 = scmp.eq.s32.totalorder %s25, 1
      %p99 = por %p97, %p98
      %p100 = scmp.ne.s32.totalorder %s91, %s92
      %p101 = scmp.eq.s32.totalorder %s25, 0
      %p102 = por %p100, %p101
      %p103 = scmp.ne.s32.totalorder %s91, %s92
      %p104 = scmp.eq.s32.totalorder %s26, 1
      %p105 = por %p103, %p104
      %p107 = scmp.ne.s32.totalorder %s92, %s106
      %p108 = scmp.eq.s32.totalorder %s26, 0
      %p109 = por %p107, %p108
      %s111 = sadd.s32 %s110, 1
      %p114 = scmp.eq.s32.totalorder %s20, 1
      %p115 = scmp.ne.s32.totalorder %s110, %s112
      %p116 = scmp.eq.s32.totalorder %s20, 0
      %p117 = por %p115, %p116
      %p118 = scmp.ne.s32.totalorder %s110, %s112
      %p119 = scmp.eq.s32.totalorder %s25, 1
      %p120 = por %p118, %p119
      %p121 = scmp.ne.s32.totalorder %s112, %s113
      %p122 = scmp.eq.s32.totalorder %s25, 0
      %p123 = por %p121, %p122
      %p124 = scmp.ne.s32.totalorder %s112, %s113
      %p125 = scmp.eq.s32.totalorder %s26, 1
      %p126 = por %p124, %p125
      %p128 = scmp.ne.s32.totalorder %s113, %s127
      %p129 = scmp.eq.s32.totalorder %s26, 0
      %p130 = por %p128, %p129
      %s132 = sadd.s32 %s131, 1
      %p135 = scmp.eq.s32.totalorder %s20, 1
      %p136 = scmp.ne.s32.totalorder %s131, %s133
      %p137 = scmp.eq.s32.totalorder %s20, 0
      %p138 = por %p136, %p137
      %p139 = scmp.ne.s32.totalorder %s131, %s133
      %p140 = scmp.eq.s32.totalorder %s25, 1
      %p141 = por %p139, %p140
      %p142 = scmp.ne.s32.totalorder %s133, %s134
      %p143 = scmp.eq.s32.totalorder %s25, 0
      %p144 = por %p142, %p143
      %p145 = scmp.ne.s32.totalorder %s133, %s134
      %p146 = scmp.eq.s32.totalorder %s26, 1
      %p147 = por %p145, %p146
      %p149 = scmp.ne.s32.totalorder %s134, %s148
      %p150 = scmp.eq.s32.totalorder %s26, 0
      %p151 = por %p149, %p150
      %s153 = sadd.s32 %s152, 1
      %p156 = scmp.eq.s32.totalorder %s20, 1
      %p157 = scmp.ne.s32.totalorder %s152, %s154
      %p158 = scmp.eq.s32.totalorder %s20, 0
      %p159 = por %p157, %p158
      %p160 = scmp.ne.s32.totalorder %s152, %s154
      %p161 = scmp.eq.s32.totalorder %s25, 1
      %p162 = por %p160, %p161
      %p163 = scmp.ne.s32.totalorder %s154, %s155
      %p164 = scmp.eq.s32.totalorder %s25, 0
      %p165 = por %p163, %p164
      %p166 = scmp.ne.s32.totalorder %s154, %s155
      %p167 = scmp.eq.s32.totalorder %s26, 1
      %p168 = por %p166, %p167
      %p170 = scmp.ne.s32.totalorder %s155, %s169
      %p171 = scmp.eq.s32.totalorder %s26, 0
      %p172 = por %p170, %p171
      %s174 = sadd.s32 %s173, 1
      %p177 = scmp.eq.s32.totalorder %s20, 1
      %p178 = scmp.ne.s32.totalorder %s173, %s175
      %p179 = scmp.eq.s32.totalorder %s20, 0
      %p180 = por %p178, %p179
      %p181 = scmp.ne.s32.totalorder %s173, %s175
      %p182 = scmp.eq.s32.totalorder %s25, 1
      %p183 = por %p181, %p182
      %p184 = scmp.ne.s32.totalorder %s175, %s176
      %p185 = scmp.eq.s32.totalorder %s25, 0
      %p186 = por %p184, %p185
      %p187 = scmp.ne.s32.totalorder %s175, %s176
      %p188 = scmp.eq.s32.totalorder %s26, 1
      %p189 = por %p187, %p188
      %p191 = scmp.ne.s32.totalorder %s176, %s190
      %p192 = scmp.eq.s32.totalorder %s26, 0
      %p193 = por %p191, %p192
      %s195 = sadd.s32 %s194, 1
      %p198 = scmp.eq.s32.totalorder %s20, 1
      %p199 = scmp.ne.s32.totalorder %s194, %s196
      %p200 = scmp.eq.s32.totalorder %s20, 0
      %p201 = por %p199, %p200
      %p202 = scmp.ne.s32.totalorder %s194, %s196
      %p203 = scmp.eq.s32.totalorder %s25, 1
      %p204 = por %p202, %p203
      %p205 = scmp.ne.s32.totalorder %s196, %s197
      %p206 = scmp.eq.s32.totalorder %s25, 0
      %p207 = por %p205, %p206
      %p208 = scmp.ne.s32.totalorder %s196, %s197
      %p209 = scmp.eq.s32.totalorder %s26, 1
      %p210 = por %p208, %p209
      %p212 = scmp.ne.s32.totalorder %s197, %s211
      %p213 = scmp.eq.s32.totalorder %s26, 0
      %p214 = por %p212, %p213
      %s216 = sadd.s32 %s215, 1
      %p219 = scmp.eq.s32.totalorder %s20, 1
      %p220 = scmp.ne.s32.totalorder %s215, %s217
      %p221 = scmp.eq.s32.totalorder %s20, 0
      %p222 = por %p220, %p221
      %p223 = scmp.ne.s32.totalorder %s215, %s217
      %p224 = scmp.eq.s32.totalorder %s25, 1
      %p225 = por %p223, %p224
      %p226 = scmp.ne.s32.totalorder %s217, %s218
      %p227 = scmp.eq.s32.totalorder %s25, 0
      %p228 = por %p226, %p227
      %p229 = scmp.ne.s32.totalorder %s217, %s218
      %p230 = scmp.eq.s32.totalorder %s26, 1
      %p231 = por %p229, %p230
      %p233 = scmp.ne.s32.totalorder %s218, %s232
      %p234 = scmp.eq.s32.totalorder %s26, 0
      %p235 = por %p233, %p234
      %s236 = ssub.s32 %s27, %s39
      %s237 = ssub.s32 %s28, %s35
      %s238 = sor.u32 %s236, %s237
      %p239 = scmp.eq.s32.totalorder %s238, 0
      %s241 = sadd.s32 %s240, 1
      %s242 = scalar_select %p239, %s240, %s241
      %p245 = pneg %p239
      %p246 = scmp.eq.s32.totalorder %s20, 1
      %p247 = por %p245, %p246
      %p248 = scmp.ne.s32.totalorder %s240, %s243
      %p249 = scmp.eq.s32.totalorder %s20, 0
      %p250 = por %p248, %p249
      %p251 = scmp.ne.s32.totalorder %s240, %s243
      %p252 = scmp.eq.s32.totalorder %s25, 1
      %p253 = por %p251, %p252
      %p254 = scmp.ne.s32.totalorder %s243, %s244
      %p255 = scmp.eq.s32.totalorder %s25, 0
      %p256 = por %p254, %p255
      %p257 = scmp.ne.s32.totalorder %s243, %s244
      %p258 = scmp.eq.s32.totalorder %s26, 1
      %p259 = por %p257, %p258
      %p261 = scmp.ne.s32.totalorder %s244, %s260
      %p262 = scmp.eq.s32.totalorder %s26, 0
      %p263 = por %p261, %p262
      %s264 = ssub.s32 %s27, %s39
      %s265 = ssub.s32 %s28, %s35
      %s266 = sor.u32 %s264, %s265
      %p267 = scmp.eq.s32.totalorder %s266, 0
      %s269 = sadd.s32 %s268, 1
      %s270 = scalar_select %p267, %s268, %s269
      %p273 = pneg %p267
      %p274 = scmp.eq.s32.totalorder %s20, 1
      %p275 = por %p273, %p274
      %p276 = scmp.ne.s32.totalorder %s268, %s271
      %p277 = scmp.eq.s32.totalorder %s20, 0
      %p278 = por %p276, %p277
      %p279 = scmp.ne.s32.totalorder %s268, %s271
      %p280 = scmp.eq.s32.totalorder %s25, 1
      %p281 = por %p279, %p280
      %p282 = scmp.ne.s32.totalorder %s271, %s272
      %p283 = scmp.eq.s32.totalorder %s25, 0
      %p284 = por %p282, %p283
      %p285 = scmp.ne.s32.totalorder %s271, %s272
      %p286 = scmp.eq.s32.totalorder %s26, 1
      %p287 = por %p285, %p286
      %p289 = scmp.ne.s32.totalorder %s272, %s288
      %p290 = scmp.eq.s32.totalorder %s26, 0
      %p291 = por %p289, %p290
      %s292 = ssub.s32 %s27, %s39
      %s293 = ssub.s32 %s28, %s35
      %s294 = sor.u32 %s292, %s293
      %p295 = scmp.eq.s32.totalorder %s294, 0
      %s297 = sadd.s32 %s296, 1
      %s298 = scalar_select %p295, %s296, %s297
      %p301 = pneg %p295
      %p302 = scmp.eq.s32.totalorder %s20, 1
      %p303 = por %p301, %p302
      %p304 = scmp.ne.s32.totalorder %s296, %s299
      %p305 = scmp.eq.s32.totalorder %s20, 0
      %p306 = por %p304, %p305
      %p307 = scmp.ne.s32.totalorder %s296, %s299
      %p308 = scmp.eq.s32.totalorder %s25, 1
      %p309 = por %p307, %p308
      %p310 = scmp.ne.s32.totalorder %s299, %s300
      %p311 = scmp.eq.s32.totalorder %s25, 0
      %p312 = por %p310, %p311
      %p313 = scmp.ne.s32.totalorder %s299, %s300
      %p314 = scmp.eq.s32.totalorder %s26, 1
      %p315 = por %p313, %p314
      %p317 = scmp.ne.s32.totalorder %s300, %s316
      %p318 = scmp.eq.s32.totalorder %s26, 0
      %p319 = por %p317, %p318
      %s320 = ssub.s32 %s27, %s39
      %s321 = ssub.s32 %s28, %s35
      %s322 = sor.u32 %s320, %s321
      %p323 = scmp.eq.s32.totalorder %s322, 0
      %s325 = sadd.s32 %s324, 1
      %s326 = scalar_select %p323, %s324, %s325
      %p329 = pneg %p323
      %p330 = scmp.eq.s32.totalorder %s20, 1
      %p331 = por %p329, %p330
      %p332 = scmp.ne.s32.totalorder %s324, %s327
      %p333 = scmp.eq.s32.totalorder %s20, 0
      %p334 = por %p332, %p333
      %p335 = scmp.ne.s32.totalorder %s324, %s327
      %p336 = scmp.eq.s32.totalorder %s25, 1
      %p337 = por %p335, %p336
      %p338 = scmp.ne.s32.totalorder %s327, %s328
      %p339 = scmp.eq.s32.totalorder %s25, 0
      %p340 = por %p338, %p339
      %p341 = scmp.ne.s32.totalorder %s327, %s328
      %p342 = scmp.eq.s32.totalorder %s26, 1
      %p343 = por %p341, %p342
      %p345 = scmp.ne.s32.totalorder %s328, %s344
      %p346 = scmp.eq.s32.totalorder %s26, 0
      %p347 = por %p345, %p346
      %p348 = scmp.le.s32.totalorder 1, %s20
      %p349 = scmp.lt.s32.totalorder %s20, 3
      %p350 = pnand %p348, %p349
      %p351 = pneg %p350
      // Predicated region
      $region9: #{_lambda_.1} parent=5 // pred_check
        _
      $region10: #{_lambda_.1} parent=5 // pred_check_branch
        %353 = sbr.rel (%p350) target = $region12
      $region11: #{_lambda_.1} parent=5 // pred_region
        %s354 = ssub.s32 %s20, 1
        // Predicated region
        $region13: #{_lambda_.1} parent=11 // pred_check
          %p355 = pneg %p81
        $region14: #{_lambda_.1} parent=11 // pred_check_branch
          %357 = sbr.rel (%p355) target = $region16
        $region15: #{_lambda_.1} parent=11 // pred_region
          _
        $region16: #{_lambda_.1} parent=11 // pred_fallthru
          _
        // Predicated region
        $region17: #{_lambda_.1} parent=11 // pred_check
          %p358 = pneg %p102
        $region18: #{_lambda_.1} parent=11 // pred_check_branch
          %360 = sbr.rel (%p358) target = $region20
        $region19: #{_lambda_.1} parent=11 // pred_region
          %s362 = ssub.s32 48, 48
          %363 = vsyncadd [#allocation3], %s362
          %s365 = sshll.u32 [#allocation2], 4
          %s366 = int_to_ptr.vmem [resolvable:$true] %s365
          %368 = dma.hbm_to_vmem [thread:$0]  %s2, 48, %s366, [#allocation3]
        $region20: #{_lambda_.1} parent=11 // pred_fallthru
          _
        // Predicated region
        $region21: #{_lambda_.1} parent=11 // pred_check
          %p369 = pneg %p123
        $region22: #{_lambda_.1} parent=11 // pred_check_branch
          %371 = sbr.rel (%p369) target = $region24
        $region23: #{_lambda_.1} parent=11 // pred_region
          _
        $region24: #{_lambda_.1} parent=11 // pred_fallthru
          _
        // Predicated region
        $region25: #{_lambda_.1} parent=11 // pred_check
          %p372 = pneg %p144
        $region26: #{_lambda_.1} parent=11 // pred_check_branch
          %374 = sbr.rel (%p372) target = $region28
        $region27: #{_lambda_.1} parent=11 // pred_region
          _
        $region28: #{_lambda_.1} parent=11 // pred_fallthru
          _
        // Predicated region
        $region29: #{_lambda_.1} parent=11 // pred_check
          %p375 = pneg %p165
        $region30: #{_lambda_.1} parent=11 // pred_check_branch
          %377 = sbr.rel (%p375) target = $region32
        $region31: #{_lambda_.1} parent=11 // pred_region
          _
        $region32: #{_lambda_.1} parent=11 // pred_fallthru
          _
        // Predicated region
        $region33: #{_lambda_.1} parent=11 // pred_check
          %p378 = pneg %p186
        $region34: #{_lambda_.1} parent=11 // pred_check_branch
          %380 = sbr.rel (%p378) target = $region36
        $region35: #{_lambda_.1} parent=11 // pred_region
          _
        $region36: #{_lambda_.1} parent=11 // pred_fallthru
          _
        // Predicated region
        $region37: #{_lambda_.1} parent=11 // pred_check
          %p381 = pneg %p207
        $region38: #{_lambda_.1} parent=11 // pred_check_branch
          %383 = sbr.rel (%p381) target = $region40
        $region39: #{_lambda_.1} parent=11 // pred_region
          _
        $region40: #{_lambda_.1} parent=11 // pred_fallthru
          _
        // Predicated region
        $region41: #{_lambda_.1} parent=11 // pred_check
          %p384 = pneg %p228
        $region42: #{_lambda_.1} parent=11 // pred_check_branch
          %386 = sbr.rel (%p384) target = $region44
        $region43: #{_lambda_.1} parent=11 // pred_region
          _
        $region44: #{_lambda_.1} parent=11 // pred_fallthru
          _
      $region12: #{_lambda_.1} parent=5 // pred_fallthru
        _
      %p387 = scmp.lt.s32.totalorder %s20, 2
      // Predicated region
      $region45: #{_lambda_.1} parent=5 // pred_check
        %p388 = pneg %p387
      $region46: #{_lambda_.1} parent=5 // pred_check_branch
        %390 = sbr.rel (%p388) target = $region48
      $region47: #{_lambda_.1} parent=5 // pred_region
        // Predicated region
        $region49: #{_lambda_.1} parent=47 // pred_check
          %p391 = pneg %p54
        $region50: #{_lambda_.1} parent=47 // pred_check_branch
          %393 = sbr.rel (%p391) target = $region52
        $region51: #{_lambda_.1} parent=47 // pred_region
          %s394 = smul.u32 2, %s28
          %p395 = scmp.lt.s32.totalorder %s27, 1
          %s396 = scalar_select %p395, %s27, 1
          %p397 = scmp.lt.s32.totalorder %s394, 1
          %s398 = scalar_select %p397, %s394, 1
          %s399 = smul.addr %s396, 16
          %s400 = sadd.s32 %s398, %s399
          %s401 = smul.addr %s400, 4
          %s402 = scalar_lea.vmem %s0, %s401
          %s403 = smul.u32 2, %s28
        $region52: #{_lambda_.1} parent=47 // pred_fallthru
          _
      $region48: #{_lambda_.1} parent=5 // pred_fallthru
        _
      %p404 = scmp.le.s32.totalorder 1, %s20
      %p405 = scmp.lt.s32.totalorder %s20, 3
      %p406 = pnand %p404, %p405
      %p407 = pneg %p406
      // Predicated region
      $region53: #{_lambda_.1} parent=5 // pred_check
        _
      $region54: #{_lambda_.1} parent=5 // pred_check_branch
        %409 = sbr.rel (%p406) target = $region56
      $region55: #{_lambda_.1} parent=5 // pred_region
        %s410 = ssub.s32 %s20, 1
        // Predicated region
        $region57: #{_lambda_.1} parent=55 // pred_check
          %p411 = pneg %p102
        $region58: #{_lambda_.1} parent=55 // pred_check_branch
          %413 = sbr.rel (%p411) target = $region60
        $region59: #{_lambda_.1} parent=55 // pred_region
          %414 = dma.done [#allocation3], 48
        $region60: #{_lambda_.1} parent=55 // pred_fallthru
          _
        %s415 = smul.u32 2, %s30
        %p416 = scmp.lt.s32.totalorder %s29, 1
        %s417 = scalar_select %p416, %s29, 1
        %p418 = scmp.lt.s32.totalorder %s415, 1
        %s419 = scalar_select %p418, %s415, 1
        %s420 = smul.addr %s417, 16
        %s421 = sadd.s32 %s419, %s420
        %s422 = smul.addr %s421, 4
        %s423 = scalar_lea.vmem %s0, %s422
        %p424 = pneg %p60
        %p425 = pneg %p57
        %p426 = pneg %p81
        %p427 = pneg %p78
        %p428 = pneg %p102
        %p429 = pneg %p99
        %p430 = pneg %p123
        %p431 = pneg %p120
        %p432 = pneg %p144
        %p433 = pneg %p141
        %p434 = pneg %p165
        %p435 = pneg %p162
        %p436 = pneg %p186
        %p437 = pneg %p183
        %p438 = pneg %p207
        %p439 = pneg %p204
        %p440 = pneg %p228
        %p441 = pneg %p225
        %p442 = pneg %p256
        %p443 = pneg %p253
        %s444 = smul.u32 2, %s30
        %p445 = scmp.lt.s32.totalorder %s29, 1
        %s446 = scalar_select %p445, %s29, 1
        %p447 = scmp.lt.s32.totalorder %s444, 1
        %s448 = scalar_select %p447, %s444, 1
        %s449 = smul.addr %s446, 16
        %s450 = sadd.s32 %s448, %s449
        %s451 = smul.addr %s450, 8
        %s452 = scalar_lea.vmem %s9, %s451
        %p453 = pneg %p284
        %p454 = pneg %p281
        %s455 = smul.u32 2, %s30
        %p456 = scmp.lt.s32.totalorder %s29, 1
        %s457 = scalar_select %p456, %s29, 1
        %p458 = scmp.lt.s32.totalorder %s455, 1
        %s459 = scalar_select %p458, %s455, 1
        %s460 = smul.addr %s457, 16
        %s461 = sadd.s32 %s459, %s460
        %s462 = smul.addr %s461, 8
        %s463 = scalar_lea.vmem %s10, %s462
        %p464 = pneg %p312
        %p465 = pneg %p309
        %s466 = smul.u32 2, %s30
        %p467 = scmp.lt.s32.totalorder %s29, 1
        %s468 = scalar_select %p467, %s29, 1
        %p469 = scmp.lt.s32.totalorder %s466, 1
        %s470 = scalar_select %p469, %s466, 1
        %s471 = smul.addr %s468, 16
        %s472 = sadd.s32 %s470, %s471
        %s473 = smul.addr %s472, 8
        %s474 = scalar_lea.vmem %s11, %s473
        %p475 = pneg %p340
        %p476 = pneg %p337
        %s477 = smul.u32 2, %s30
        %p478 = scmp.lt.s32.totalorder %s29, 1
        %s479 = scalar_select %p478, %s29, 1
        %p480 = scmp.lt.s32.totalorder %s477, 1
        %s481 = scalar_select %p480, %s477, 1
        %s482 = smul.addr %s479, 16
        %s483 = sadd.s32 %s481, %s482
        %s484 = smul.addr %s483, 8
        %s485 = scalar_lea.vmem %s12, %s484
        %s486 = smul.u32 2, %s30
        %p487 = scmp.lt.s32.totalorder %s29, 1
        %s488 = scalar_select %p487, %s29, 1
        %p489 = scmp.lt.s32.totalorder %s486, 1
        %s490 = scalar_select %p489, %s486, 1
        %s491 = smul.addr %s488, 16
        %s492 = sadd.s32 %s490, %s491
        %s493 = smul.addr %s492, 4
        %s494 = scalar_lea.vmem %s0, %s493
        %s495 = smul.u32 2, %s30
        %s496 = smul.u32 2, %s30
        %p497 = scmp.lt.s32.totalorder %s29, 1
        %s498 = scalar_select %p497, %s29, 1
        %p499 = scmp.lt.s32.totalorder %s496, 1
        %s500 = scalar_select %p499, %s496, 1
        %s501 = smul.addr %s498, 16
        %s502 = sadd.s32 %s500, %s501
        %s503 = smul.addr %s502, 8
        %s504 = scalar_lea.vmem %s9, %s503
        %s505 = smul.u32 2, %s30
        %s506 = smul.u32 2, %s30
        %p507 = scmp.lt.s32.totalorder %s29, 1
        %s508 = scalar_select %p507, %s29, 1
        %p509 = scmp.lt.s32.totalorder %s506, 1
        %s510 = scalar_select %p509, %s506, 1
        %s511 = smul.addr %s508, 16
        %s512 = sadd.s32 %s510, %s511
        %s513 = smul.addr %s512, 8
        %s514 = scalar_lea.vmem %s10, %s513
        %s515 = smul.u32 2, %s30
        %s516 = smul.u32 2, %s30
        %p517 = scmp.lt.s32.totalorder %s29, 1
        %s518 = scalar_select %p517, %s29, 1
        %p519 = scmp.lt.s32.totalorder %s516, 1
        %s520 = scalar_select %p519, %s516, 1
        %s521 = smul.addr %s518, 16
        %s522 = sadd.s32 %s520, %s521
        %s523 = smul.addr %s522, 8
        %s524 = scalar_lea.vmem %s11, %s523
        %s525 = smul.u32 2, %s30
        %s526 = smul.u32 2, %s30
        %p527 = scmp.lt.s32.totalorder %s29, 1
        %s528 = scalar_select %p527, %s29, 1
        %p529 = scmp.lt.s32.totalorder %s526, 1
        %s530 = scalar_select %p529, %s526, 1
        %s531 = smul.addr %s528, 16
        %s532 = sadd.s32 %s530, %s531
        %s533 = smul.addr %s532, 8
        %s534 = scalar_lea.vmem %s12, %s533
        %s535 = smul.u32 2, %s30
        %v537 = vld [vmem:[%s494] sm:$0xf]
        %v538 = vld [vmem:[%s494 + $0x4] sm:$0xf]
        %v539 = vld [vmem:[%s494 + $0x8] sm:$0xf]
        %v540 = vld [vmem:[%s494 + $0xc] sm:$0xf]
        %v541 = vld [vmem:[%s494 + $0x10] sm:$0xf]
        %v542 = vld [vmem:[%s494 + $0x14] sm:$0xf]
        %v543 = vld [vmem:[%s494 + $0x18] sm:$0xf]
        %v544 = vld [vmem:[%s494 + $0x1c] sm:$0xf]
        %v545 = vld [vmem:[%s494 + $0x20] sm:$0xf]
        %v546 = vld [vmem:[%s494 + $0x24] sm:$0xf]
        %v547 = vld [vmem:[%s494 + $0x28] sm:$0xf]
        %v548 = vld [vmem:[%s494 + $0x2c] sm:$0xf]
        %v549 = vld [vmem:[%s494 + $0x30] sm:$0xf]
        %v550 = vld [vmem:[%s494 + $0x34] sm:$0xf]
        %v551 = vld [vmem:[%s494 + $0x38] sm:$0xf]
        %v552 = vld [vmem:[%s494 + $0x3c] sm:$0xf]
        %v553 = vld [vmem:[%s1] sm:$0xff]
        %v554 = vld [vmem:[%s1 + $0x8] sm:$0xf]
        %v555 = vld [vmem:[%s1 + $0xc] sm:$0xff]
        %v556 = vld [vmem:[%s1 + $0x14] sm:$0xf]
        %v557 = vld [vmem:[%s1 + $0x18] sm:$0xff]
        %v558 = vld [vmem:[%s1 + $0x20] sm:$0xf]
        %v559 = vld [vmem:[%s1 + $0x24] sm:$0xff]
        %v560 = vld [vmem:[%s1 + $0x2c] sm:$0xf]
        %v561 = vld [vmem:[%s1 + $0x30] sm:$0xff]
        %v562 = vld [vmem:[%s1 + $0x38] sm:$0xf]
        %v563 = vld [vmem:[%s1 + $0x3c] sm:$0xff]
        %v564 = vld [vmem:[%s1 + $0x44] sm:$0xf]
        %v565 = vld [vmem:[%s1 + $0x48] sm:$0xff]
        %v566 = vld [vmem:[%s1 + $0x50] sm:$0xf]
        %v567 = vld [vmem:[%s1 + $0x54] sm:$0xff]
        %v568 = vld [vmem:[%s1 + $0x5c] sm:$0xf]
        %v569 = vld [vmem:[%s1 + $0x60] sm:$0xff]
        %v570 = vld [vmem:[%s1 + $0x68] sm:$0xf]
        %v571 = vld [vmem:[%s1 + $0x6c] sm:$0xff]
        %v572 = vld [vmem:[%s1 + $0x74] sm:$0xf]
        %v573 = vld [vmem:[%s1 + $0x78] sm:$0xff]
        %v574 = vld [vmem:[%s1 + $0x80] sm:$0xf]
        %v575 = vld [vmem:[%s1 + $0x84] sm:$0xff]
        %v576 = vld [vmem:[%s1 + $0x8c] sm:$0xf]
        %v577 = vld [vmem:[%s1 + $0x90] sm:$0xff]
        %v578 = vld [vmem:[%s1 + $0x98] sm:$0xf]
        %v579 = vld [vmem:[%s1 + $0x9c] sm:$0xff]
        %v580 = vld [vmem:[%s1 + $0xa4] sm:$0xf]
        %v581 = vld [vmem:[%s1 + $0xa8] sm:$0xff]
        %v582 = vld [vmem:[%s1 + $0xb0] sm:$0xf]
        %v583 = vld [vmem:[%s1 + $0xb4] sm:$0xff]
        %v584 = vld [vmem:[%s1 + $0xbc] sm:$0xf]
        %v585 = vld [vmem:[#allocation2] sm:$0x7]
        %v587 = vlaneseq
        %v588 = vshrl.u32 %v587, 7
        %v589 = vsub.s32 0, %v588
        %v590 = vrot.slane %v585, %v589
        %v591 = vlaneseq
        %v592 = vshrl.u32 %v591, 7
        %v593 = vsub.s32 1, %v592
        %v594 = vrot.slane %v585, %v593
        %v595 = vlaneseq
        %v596 = vshrl.u32 %v595, 7
        %v597 = vsub.s32 2, %v596
        %v598 = vrot.slane %v585, %v597
        %v618 = vunpack.c.l.b16 %v537
        %v619 = vunpack.c.l.b16 %v538
        %v620 = vunpack.c.l.b16 %v539
        %v621 = vunpack.c.l.b16 %v540
        %v622 = vunpack.c.l.b16 %v541
        %v623 = vunpack.c.l.b16 %v542
        %v624 = vunpack.c.l.b16 %v543
        %v625 = vunpack.c.l.b16 %v544
        %v626 = vunpack.c.l.b16 %v545
        %v627 = vunpack.c.l.b16 %v546
        %v628 = vunpack.c.l.b16 %v547
        %v629 = vunpack.c.l.b16 %v548
        %v630 = vunpack.c.l.b16 %v549
        %v631 = vunpack.c.l.b16 %v550
        %v632 = vunpack.c.l.b16 %v551
        %v633 = vunpack.c.l.b16 %v552
        %v634 = vpack.c.b16 %v619, %v618
        %v635 = vpack.c.b16 %v621, %v620
        %v636 = vpack.c.b16 %v623, %v622
        %v637 = vpack.c.b16 %v625, %v624
        %v638 = vpack.c.b16 %v627, %v626
        %v639 = vpack.c.b16 %v629, %v628
        %v640 = vpack.c.b16 %v631, %v630
        %v641 = vpack.c.b16 %v633, %v632
        %v682 = vunpack.c.l.b16 %v553
        %v683 = vunpack.c.h.b16 %v553
        %v684 = vunpack.c.l.b16 %v554
        %v685 = vunpack.c.l.b16 %v555
        %v686 = vunpack.c.h.b16 %v555
        %v687 = vunpack.c.l.b16 %v556
        %v688 = vunpack.c.l.b16 %v557
        %v689 = vunpack.c.h.b16 %v557
        %v690 = vunpack.c.l.b16 %v558
        %v691 = vunpack.c.l.b16 %v559
        %v692 = vunpack.c.h.b16 %v559
        %v693 = vunpack.c.l.b16 %v560
        %v694 = vunpack.c.l.b16 %v561
        %v695 = vunpack.c.h.b16 %v561
        %v696 = vunpack.c.l.b16 %v562
        %v697 = vunpack.c.l.b16 %v563
        %v698 = vunpack.c.h.b16 %v563
        %v699 = vunpack.c.l.b16 %v564
        %v700 = vunpack.c.l.b16 %v565
        %v701 = vunpack.c.h.b16 %v565
        %v702 = vunpack.c.l.b16 %v566
        %v703 = vunpack.c.l.b16 %v567
        %v704 = vunpack.c.h.b16 %v567
        %v705 = vunpack.c.l.b16 %v568
        %v706 = vunpack.c.l.b16 %v569
        %v707 = vunpack.c.h.b16 %v569
        %v708 = vunpack.c.l.b16 %v570
        %v709 = vunpack.c.l.b16 %v571
        %v710 = vunpack.c.h.b16 %v571
        %v711 = vunpack.c.l.b16 %v572
        %v712 = vunpack.c.l.b16 %v573
        %v713 = vunpack.c.h.b16 %v573
        %v714 = vunpack.c.l.b16 %v574
        %v715 = vunpack.c.l.b16 %v575
        %v716 = vunpack.c.h.b16 %v575
        %v717 = vunpack.c.l.b16 %v576
        %v718 = vunpack.c.l.b16 %v577
        %v719 = vunpack.c.h.b16 %v577
        %v720 = vunpack.c.l.b16 %v578
        %v721 = vunpack.c.l.b16 %v579
        %v722 = vunpack.c.h.b16 %v579
        %v723 = vunpack.c.l.b16 %v580
        %v724 = vunpack.c.l.b16 %v581
        %v725 = vunpack.c.h.b16 %v581
        %v726 = vunpack.c.l.b16 %v582
        %v727 = vunpack.c.l.b16 %v583
        %v728 = vunpack.c.h.b16 %v583
        %v729 = vunpack.c.l.b16 %v584
        %v730 = vpack.c.b16 %v685, %v682
        %v731 = vpack.c.b16 %v686, %v683
        %v732 = vpack.c.b16 %v687, %v684
        %v733 = vpack.c.b16 %v691, %v688
        %v734 = vpack.c.b16 %v692, %v689
        %v735 = vpack.c.b16 %v693, %v690
        %v736 = vpack.c.b16 %v697, %v694
        %v737 = vpack.c.b16 %v698, %v695
        %v738 = vpack.c.b16 %v699, %v696
        %v739 = vpack.c.b16 %v703, %v700
        %v740 = vpack.c.b16 %v704, %v701
        %v741 = vpack.c.b16 %v705, %v702
        %v742 = vpack.c.b16 %v709, %v706
        %v743 = vpack.c.b16 %v710, %v707
        %v744 = vpack.c.b16 %v711, %v708
        %v745 = vpack.c.b16 %v715, %v712
        %v746 = vpack.c.b16 %v716, %v713
        %v747 = vpack.c.b16 %v717, %v714
        %v748 = vpack.c.b16 %v721, %v718
        %v749 = vpack.c.b16 %v722, %v719
        %v750 = vpack.c.b16 %v723, %v720
        %v751 = vpack.c.b16 %v727, %v724
        %v752 = vpack.c.b16 %v728, %v725
        %v753 = vpack.c.b16 %v729, %v726
        %778 = vmatprep.subr.bf16.mxu0 %v752
        %779 = vmatpush1.bf16.msra.mxu0 %v751
        %780 = vmatprep.subr.bf16.mxu0 %v749
        %781 = vmatpush1.bf16.msra.mxu0 %v748
        %782 = vmatprep.subr.bf16.mxu0 %v746
        %783 = vmatpush1.bf16.msra.mxu0 %v745
        %784 = vmatprep.subr.bf16.mxu0 %v743
        %785 = vmatpush1.bf16.msra.mxu0 %v742
        %786 = vmatprep.subr.bf16.mxu0 %v740
        %787 = vmatpush1.bf16.msra.mxu0 %v739
        %788 = vmatprep.subr.bf16.mxu0 %v737
        %789 = vmatpush1.bf16.msra.mxu0 %v736
        %790 = vmatprep.subr.bf16.mxu0 %v734
        %791 = vmatpush1.bf16.msra.mxu0 %v733
        %792 = vmatprep.subr.bf16.mxu0 %v731
        %793 = vmatpush1.bf16.msra.mxu0 %v730
        %794 = vmatprep.subr.bf16.mxu0 0
        %795 = vmatpush2.bf16.msra.mxu0 0
        %796 = vmatprep.subr.bf16.mxu0 0
        %797 = vmatpush2.bf16.msra.mxu0 0
        %798 = vmatprep.subr.bf16.mxu0 0
        %799 = vmatpush2.bf16.msra.mxu0 0
        %800 = vmatprep.subr.bf16.mxu0 0
        %801 = vmatpush2.bf16.msra.mxu0 0
        %802 = vmatprep.subr.bf16.mxu0 0
        %803 = vmatpush2.bf16.msra.mxu0 0
        %804 = vmatprep.subr.bf16.mxu0 0
        %805 = vmatpush2.bf16.msra.mxu0 0
        %806 = vmatprep.subr.bf16.mxu0 0
        %807 = vmatpush2.bf16.msra.mxu0 0
        %808 = vmatprep.subr.bf16.mxu0 0
        %809 = vmatpush2.bf16.msra.mxu0 0
        %810 = vmatprep.mubr.bf16.mxu0 0
        %811 = vmatmul.mubr.bf16.gmra.mxu0 %v634
        %v812 = vpop.f32.mrf.mxu0
        %v813 = vadd.f32 %v590, %v812
        %v814 = vpop.f32.mrf.mxu0
        %v815 = vadd.f32 %v594, %v814
        %v816 = vpop.f32.mrf.mxu0
        %v817 = vadd.f32 %v590, %v816
        %v818 = vpop.f32.mrf.mxu0
        %v819 = vadd.f32 %v594, %v818
        %820 = vmatprep.mubr.bf16.mxu0 0
        %821 = vmatmul.mubr.bf16.gmra.mxu0 %v635
        %v822 = vpop.f32.mrf.mxu0
        %v823 = vadd.f32 %v590, %v822
        %v824 = vpop.f32.mrf.mxu0
        %v825 = vadd.f32 %v594, %v824
        %v826 = vpop.f32.mrf.mxu0
        %v827 = vadd.f32 %v590, %v826
        %v828 = vpop.f32.mrf.mxu0
        %v829 = vadd.f32 %v594, %v828
        %830 = vmatprep.mubr.bf16.mxu0 0
        %831 = vmatmul.mubr.bf16.gmra.mxu0 %v636
        %v832 = vpop.f32.mrf.mxu0
        %v833 = vadd.f32 %v590, %v832
        %v834 = vpop.f32.mrf.mxu0
        %v835 = vadd.f32 %v594, %v834
        %v836 = vpop.f32.mrf.mxu0
        %v837 = vadd.f32 %v590, %v836
        %v838 = vpop.f32.mrf.mxu0
        %v839 = vadd.f32 %v594, %v838
        %840 = vmatprep.mubr.bf16.mxu0 0
        %841 = vmatmul.mubr.bf16.gmra.mxu0 %v637
        %v842 = vpop.f32.mrf.mxu0
        %v843 = vadd.f32 %v590, %v842
        %v844 = vpop.f32.mrf.mxu0
        %v845 = vadd.f32 %v594, %v844
        %v846 = vpop.f32.mrf.mxu0
        %v847 = vadd.f32 %v590, %v846
        %v848 = vpop.f32.mrf.mxu0
        %v849 = vadd.f32 %v594, %v848
        %850 = vmatprep.mubr.bf16.mxu0 0
        %851 = vmatmul.mubr.bf16.gmra.mxu0 %v638
        %v852 = vpop.f32.mrf.mxu0
        %v853 = vadd.f32 %v590, %v852
        %v854 = vpop.f32.mrf.mxu0
        %v855 = vadd.f32 %v594, %v854
        %v856 = vpop.f32.mrf.mxu0
        %v857 = vadd.f32 %v590, %v856
        %v858 = vpop.f32.mrf.mxu0
        %v859 = vadd.f32 %v594, %v858
        %860 = vmatprep.mubr.bf16.mxu0 0
        %861 = vmatmul.mubr.bf16.gmra.mxu0 %v639
        %v862 = vpop.f32.mrf.mxu0
        %v863 = vadd.f32 %v590, %v862
        %v864 = vpop.f32.mrf.mxu0
        %v865 = vadd.f32 %v594, %v864
        %v866 = vpop.f32.mrf.mxu0
        %v867 = vadd.f32 %v590, %v866
        %v868 = vpop.f32.mrf.mxu0
        %v869 = vadd.f32 %v594, %v868
        %870 = vmatprep.mubr.bf16.mxu0 0
        %871 = vmatmul.mubr.bf16.gmra.mxu0 %v640
        %v872 = vpop.f32.mrf.mxu0
        %v873 = vadd.f32 %v590, %v872
        %v874 = vpop.f32.mrf.mxu0
        %v875 = vadd.f32 %v594, %v874
        %v876 = vpop.f32.mrf.mxu0
        %v877 = vadd.f32 %v590, %v876
        %v878 = vpop.f32.mrf.mxu0
        %v879 = vadd.f32 %v594, %v878
        %880 = vmatprep.mubr.bf16.mxu0 0
        %881 = vmatmul.mubr.bf16.gmra.mxu0 %v641
        %v882 = vpop.f32.mrf.mxu0
        %v883 = vadd.f32 %v590, %v882
        %v884 = vpop.f32.mrf.mxu0
        %v885 = vadd.f32 %v594, %v884
        %v886 = vpop.f32.mrf.mxu0
        %v887 = vadd.f32 %v590, %v886
        %v888 = vpop.f32.mrf.mxu0
        %v889 = vadd.f32 %v594, %v888
        %890 = vdwg.mxu0
        %891 = vmatprep.subr.bf16.mxu0 0
        %892 = vmatpush1.bf16.msra.mxu0 %v753
        %893 = vmatprep.subr.bf16.mxu0 0
        %894 = vmatpush1.bf16.msra.mxu0 %v750
        %895 = vmatprep.subr.bf16.mxu0 0
        %896 = vmatpush1.bf16.msra.mxu0 %v747
        %897 = vmatprep.subr.bf16.mxu0 0
        %898 = vmatpush1.bf16.msra.mxu0 %v744
        %899 = vmatprep.subr.bf16.mxu0 0
        %900 = vmatpush1.bf16.msra.mxu0 %v741
        %901 = vmatprep.subr.bf16.mxu0 0
        %902 = vmatpush1.bf16.msra.mxu0 %v738
        %903 = vmatprep.subr.bf16.mxu0 0
        %904 = vmatpush1.bf16.msra.mxu0 %v735
        %905 = vmatprep.subr.bf16.mxu0 0
        %906 = vmatpush1.bf16.msra.mxu0 %v732
        %907 = vmatprep.subr.bf16.mxu0 0
        %908 = vmatpush2.bf16.msra.mxu0 0
        %909 = vmatprep.subr.bf16.mxu0 0
        %910 = vmatpush2.bf16.msra.mxu0 0
        %911 = vmatprep.subr.bf16.mxu0 0
        %912 = vmatpush2.bf16.msra.mxu0 0
        %913 = vmatprep.subr.bf16.mxu0 0
        %914 = vmatpush2.bf16.msra.mxu0 0
        %915 = vmatprep.subr.bf16.mxu0 0
        %916 = vmatpush2.bf16.msra.mxu0 0
        %917 = vmatprep.subr.bf16.mxu0 0
        %918 = vmatpush2.bf16.msra.mxu0 0
        %919 = vmatprep.subr.bf16.mxu0 0
        %920 = vmatpush2.bf16.msra.mxu0 0
        %921 = vmatprep.subr.bf16.mxu0 0
        %922 = vmatpush2.bf16.msra.mxu0 0
        %923 = vmatprep.mubr.bf16.mxu0 0
        %924 = vmatmul.mubr.bf16.gmra.mxu0 %v634
        %v925 = vpop.f32.mrf.mxu0
        %v926 = vadd.f32 %v598, %v925
        %v927 = vpop.f32.mrf.mxu0
        %v928 = vpop.f32.mrf.mxu0
        %v929 = vadd.f32 %v598, %v928
        %v930 = vpop.f32.mrf.mxu0
        %931 = vmatprep.mubr.bf16.mxu0 0
        %932 = vmatmul.mubr.bf16.gmra.mxu0 %v635
        %v933 = vpop.f32.mrf.mxu0
        %v934 = vadd.f32 %v598, %v933
        %v935 = vpop.f32.mrf.mxu0
        %v936 = vpop.f32.mrf.mxu0
        %v937 = vadd.f32 %v598, %v936
        %v938 = vpop.f32.mrf.mxu0
        %939 = vmatprep.mubr.bf16.mxu0 0
        %940 = vmatmul.mubr.bf16.gmra.mxu0 %v636
        %v941 = vpop.f32.mrf.mxu0
        %v942 = vadd.f32 %v598, %v941
        %v943 = vpop.f32.mrf.mxu0
        %v944 = vpop.f32.mrf.mxu0
        %v945 = vadd.f32 %v598, %v944
        %v946 = vpop.f32.mrf.mxu0
        %947 = vmatprep.mubr.bf16.mxu0 0
        %948 = vmatmul.mubr.bf16.gmra.mxu0 %v637
        %v949 = vpop.f32.mrf.mxu0
        %v950 = vadd.f32 %v598, %v949
        %v951 = vpop.f32.mrf.mxu0
        %v952 = vpop.f32.mrf.mxu0
        %v953 = vadd.f32 %v598, %v952
        %v954 = vpop.f32.mrf.mxu0
        %955 = vmatprep.mubr.bf16.mxu0 0
        %956 = vmatmul.mubr.bf16.gmra.mxu0 %v638
        %v957 = vpop.f32.mrf.mxu0
        %v958 = vadd.f32 %v598, %v957
        %v959 = vpop.f32.mrf.mxu0
        %v960 = vpop.f32.mrf.mxu0
        %v961 = vadd.f32 %v598, %v960
        %v962 = vpop.f32.mrf.mxu0
        %963 = vmatprep.mubr.bf16.mxu0 0
        %964 = vmatmul.mubr.bf16.gmra.mxu0 %v639
        %v965 = vpop.f32.mrf.mxu0
        %v966 = vadd.f32 %v598, %v965
        %v967 = vpop.f32.mrf.mxu0
        %v968 = vpop.f32.mrf.mxu0
        %v969 = vadd.f32 %v598, %v968
        %v970 = vpop.f32.mrf.mxu0
        %971 = vmatprep.mubr.bf16.mxu0 0
        %972 = vmatmul.mubr.bf16.gmra.mxu0 %v640
        %v973 = vpop.f32.mrf.mxu0
        %v974 = vadd.f32 %v598, %v973
        %v975 = vpop.f32.mrf.mxu0
        %v976 = vpop.f32.mrf.mxu0
        %v977 = vadd.f32 %v598, %v976
        %v978 = vpop.f32.mrf.mxu0
        %979 = vmatprep.mubr.bf16.mxu0 0
        %980 = vmatmul.mubr.bf16.gmra.mxu0 %v641
        %v981 = vpop.f32.mrf.mxu0
        %v982 = vadd.f32 %v598, %v981
        %v983 = vpop.f32.mrf.mxu0
        %v984 = vpop.f32.mrf.mxu0
        %v985 = vadd.f32 %v598, %v984
        %v986 = vpop.f32.mrf.mxu0
        %987 = vdwg.mxu0
        %v988 = vmax.f32 %v813, 0.0
        %v989 = vmax.f32 %v815, 0.0
        %v990 = vmax.f32 %v926, 0.0
        %v991 = vmax.f32 %v817, 0.0
        %v992 = vmax.f32 %v819, 0.0
        %v993 = vmax.f32 %v929, 0.0
        %v994 = vmax.f32 %v823, 0.0
        %v995 = vmax.f32 %v825, 0.0
        %v996 = vmax.f32 %v934, 0.0
        %v997 = vmax.f32 %v827, 0.0
        %v998 = vmax.f32 %v829, 0.0
        %v999 = vmax.f32 %v937, 0.0
        %v1000 = vmax.f32 %v833, 0.0
        %v1001 = vmax.f32 %v835, 0.0
        %v1002 = vmax.f32 %v942, 0.0
        %v1003 = vmax.f32 %v837, 0.0
        %v1004 = vmax.f32 %v839, 0.0
        %v1005 = vmax.f32 %v945, 0.0
        %v1006 = vmax.f32 %v843, 0.0
        %v1007 = vmax.f32 %v845, 0.0
        %v1008 = vmax.f32 %v950, 0.0
        %v1009 = vmax.f32 %v847, 0.0
        %v1010 = vmax.f32 %v849, 0.0
        %v1011 = vmax.f32 %v953, 0.0
        %v1012 = vmax.f32 %v853, 0.0
        %v1013 = vmax.f32 %v855, 0.0
        %v1014 = vmax.f32 %v958, 0.0
        %v1015 = vmax.f32 %v857, 0.0
        %v1016 = vmax.f32 %v859, 0.0
        %v1017 = vmax.f32 %v961, 0.0
        %v1018 = vmax.f32 %v863, 0.0
        %v1019 = vmax.f32 %v865, 0.0
        %v1020 = vmax.f32 %v966, 0.0
        %v1021 = vmax.f32 %v867, 0.0
        %v1022 = vmax.f32 %v869, 0.0
        %v1023 = vmax.f32 %v969, 0.0
        %v1024 = vmax.f32 %v873, 0.0
        %v1025 = vmax.f32 %v875, 0.0
        %v1026 = vmax.f32 %v974, 0.0
        %v1027 = vmax.f32 %v877, 0.0
        %v1028 = vmax.f32 %v879, 0.0
        %v1029 = vmax.f32 %v977, 0.0
        %v1030 = vmax.f32 %v883, 0.0
        %v1031 = vmax.f32 %v885, 0.0
        %v1032 = vmax.f32 %v982, 0.0
        %v1033 = vmax.f32 %v887, 0.0
        %v1034 = vmax.f32 %v889, 0.0
        %v1035 = vmax.f32 %v985, 0.0
        %1036 = vst [vmem:[%s504] sm:$0xff] %v988
        %1037 = vst [vmem:[%s504 + $0x8] sm:$0xff] %v991
        %1038 = vst [vmem:[%s504 + $0x10] sm:$0xff] %v994
        %1039 = vst [vmem:[%s504 + $0x18] sm:$0xff] %v997
        %1040 = vst [vmem:[%s504 + $0x20] sm:$0xff] %v1000
        %1041 = vst [vmem:[%s504 + $0x28] sm:$0xff] %v1003
        %1042 = vst [vmem:[%s504 + $0x30] sm:$0xff] %v1006
        %1043 = vst [vmem:[%s504 + $0x38] sm:$0xff] %v1009
        %1044 = vst [vmem:[%s504 + $0x40] sm:$0xff] %v1012
        %1045 = vst [vmem:[%s504 + $0x48] sm:$0xff] %v1015
        %1046 = vst [vmem:[%s504 + $0x50] sm:$0xff] %v1018
        %1047 = vst [vmem:[%s504 + $0x58] sm:$0xff] %v1021
        %1048 = vst [vmem:[%s504 + $0x60] sm:$0xff] %v1024
        %1049 = vst [vmem:[%s504 + $0x68] sm:$0xff] %v1027
        %1050 = vst [vmem:[%s504 + $0x70] sm:$0xff] %v1030
        %1051 = vst [vmem:[%s504 + $0x78] sm:$0xff] %v1033
        %v1052 = vpack.c.bf16 %v992, %v989
        %v1053 = vpack.c.bf16 %v998, %v995
        %v1054 = vpack.c.bf16 %v1004, %v1001
        %v1055 = vpack.c.bf16 %v1010, %v1007
        %v1056 = vpack.c.bf16 %v1016, %v1013
        %v1057 = vpack.c.bf16 %v1022, %v1019
        %v1058 = vpack.c.bf16 %v1028, %v1025
        %v1059 = vpack.c.bf16 %v1034, %v1031
        %v1060 = vld [vmem:[%s3] sm:$0xff]
        %v1061 = vld [vmem:[%s3 + $0x8] sm:$0xf]
        %v1062 = vld [vmem:[%s3 + $0xc] sm:$0xff]
        %v1063 = vld [vmem:[%s3 + $0x14] sm:$0xf]
        %v1064 = vld [vmem:[%s3 + $0x18] sm:$0xff]
        %v1065 = vld [vmem:[%s3 + $0x20] sm:$0xf]
        %v1066 = vld [vmem:[%s3 + $0x24] sm:$0xff]
        %v1067 = vld [vmem:[%s3 + $0x2c] sm:$0xf]
        %v1068 = vld [vmem:[%s3 + $0x30] sm:$0xff]
        %v1069 = vld [vmem:[%s3 + $0x38] sm:$0xf]
        %v1070 = vld [vmem:[%s3 + $0x3c] sm:$0xff]
        %v1071 = vld [vmem:[%s3 + $0x44] sm:$0xf]
        %v1072 = vld [vmem:[%s3 + $0x48] sm:$0xff]
        %v1073 = vld [vmem:[%s3 + $0x50] sm:$0xf]
        %v1074 = vld [vmem:[%s3 + $0x54] sm:$0xff]
        %v1075 = vld [vmem:[%s3 + $0x5c] sm:$0xf]
        %v1076 = vld [vmem:[%s3 + $0x60] sm:$0xff]
        %v1077 = vld [vmem:[%s3 + $0x68] sm:$0xf]
        %v1078 = vld [vmem:[%s3 + $0x6c] sm:$0xff]
        %v1079 = vld [vmem:[%s3 + $0x74] sm:$0xf]
        %v1080 = vld [vmem:[%s3 + $0x78] sm:$0xff]
        %v1081 = vld [vmem:[%s3 + $0x80] sm:$0xf]
        %v1082 = vld [vmem:[%s3 + $0x84] sm:$0xff]
        %v1083 = vld [vmem:[%s3 + $0x8c] sm:$0xf]
        %v1084 = vld [vmem:[%s3 + $0x90] sm:$0xff]
        %v1085 = vld [vmem:[%s3 + $0x98] sm:$0xf]
        %v1086 = vld [vmem:[%s3 + $0x9c] sm:$0xff]
        %v1087 = vld [vmem:[%s3 + $0xa4] sm:$0xf]
        %v1088 = vld [vmem:[%s3 + $0xa8] sm:$0xff]
        %v1089 = vld [vmem:[%s3 + $0xb0] sm:$0xf]
        %v1090 = vld [vmem:[%s3 + $0xb4] sm:$0xff]
        %v1091 = vld [vmem:[%s3 + $0xbc] sm:$0xf]
        %v1092 = vld [vmem:[%s4] sm:$0x1]
        %v1109 = vunpack.c.h.b16 %v1060
        %v1110 = vunpack.c.h.b16 %v1062
        %v1111 = vunpack.c.h.b16 %v1064
        %v1112 = vunpack.c.h.b16 %v1066
        %v1113 = vunpack.c.h.b16 %v1068
        %v1114 = vunpack.c.h.b16 %v1070
        %v1115 = vunpack.c.h.b16 %v1072
        %v1116 = vunpack.c.h.b16 %v1074
        %v1117 = vunpack.c.h.b16 %v1076
        %v1118 = vunpack.c.h.b16 %v1078
        %v1119 = vunpack.c.h.b16 %v1080
        %v1120 = vunpack.c.h.b16 %v1082
        %v1121 = vunpack.c.h.b16 %v1084
        %v1122 = vunpack.c.h.b16 %v1086
        %v1123 = vunpack.c.h.b16 %v1088
        %v1124 = vunpack.c.h.b16 %v1090
        %v1125 = vpack.c.b16 %v1110, %v1109
        %v1126 = vpack.c.b16 %v1112, %v1111
        %v1127 = vpack.c.b16 %v1114, %v1113
        %v1128 = vpack.c.b16 %v1116, %v1115
        %v1129 = vpack.c.b16 %v1118, %v1117
        %v1130 = vpack.c.b16 %v1120, %v1119
        %v1131 = vpack.c.b16 %v1122, %v1121
        %v1132 = vpack.c.b16 %v1124, %v1123
        %1141 = vmatprep.subr.bf16.mxu0 0
        %1142 = vmatpush1.bf16.msra.mxu0 %v1132
        %1143 = vmatprep.subr.bf16.mxu0 0
        %1144 = vmatpush1.bf16.msra.mxu0 %v1131
        %1145 = vmatprep.subr.bf16.mxu0 0
        %1146 = vmatpush1.bf16.msra.mxu0 %v1130
        %1147 = vmatprep.subr.bf16.mxu0 0
        %1148 = vmatpush1.bf16.msra.mxu0 %v1129
        %1149 = vmatprep.subr.bf16.mxu0 0
        %1150 = vmatpush1.bf16.msra.mxu0 %v1128
        %1151 = vmatprep.subr.bf16.mxu0 0
        %1152 = vmatpush1.bf16.msra.mxu0 %v1127
        %1153 = vmatprep.subr.bf16.mxu0 0
        %1154 = vmatpush1.bf16.msra.mxu0 %v1126
        %1155 = vmatprep.subr.bf16.mxu0 0
        %1156 = vmatpush1.bf16.msra.mxu0 %v1125
        %1157 = vmatprep.subr.bf16.mxu0 0
        %1158 = vmatpush2.bf16.msra.mxu0 0
        %1159 = vmatprep.subr.bf16.mxu0 0
        %1160 = vmatpush2.bf16.msra.mxu0 0
        %1161 = vmatprep.subr.bf16.mxu0 0
        %1162 = vmatpush2.bf16.msra.mxu0 0
        %1163 = vmatprep.subr.bf16.mxu0 0
        %1164 = vmatpush2.bf16.msra.mxu0 0
        %1165 = vmatprep.subr.bf16.mxu0 0
        %1166 = vmatpush2.bf16.msra.mxu0 0
        %1167 = vmatprep.subr.bf16.mxu0 0
        %1168 = vmatpush2.bf16.msra.mxu0 0
        %1169 = vmatprep.subr.bf16.mxu0 0
        %1170 = vmatpush2.bf16.msra.mxu0 0
        %1171 = vmatprep.subr.bf16.mxu0 0
        %1172 = vmatpush2.bf16.msra.mxu0 0
        %1173 = vmatprep.mubr.bf16.mxu0 0
        %1174 = vmatmul.mubr.bf16.gmra.mxu0 %v1052
        %v1175 = vpop.f32.mrf.mxu0
        %v1176 = vadd.f32 0.0, %v1175
        %v1177 = vpop.f32.mrf.mxu0
        %v1178 = vpop.f32.mrf.mxu0
        %v1179 = vadd.f32 0.0, %v1178
        %v1180 = vpop.f32.mrf.mxu0
        %1181 = vmatprep.mubr.bf16.mxu0 0
        %1182 = vmatmul.mubr.bf16.gmra.mxu0 %v1053
        %v1183 = vpop.f32.mrf.mxu0
        %v1184 = vadd.f32 0.0, %v1183
        %v1185 = vpop.f32.mrf.mxu0
        %v1186 = vpop.f32.mrf.mxu0
        %v1187 = vadd.f32 0.0, %v1186
        %v1188 = vpop.f32.mrf.mxu0
        %1189 = vmatprep.mubr.bf16.mxu0 0
        %1190 = vmatmul.mubr.bf16.gmra.mxu0 %v1054
        %v1191 = vpop.f32.mrf.mxu0
        %v1192 = vadd.f32 0.0, %v1191
        %v1193 = vpop.f32.mrf.mxu0
        %v1194 = vpop.f32.mrf.mxu0
        %v1195 = vadd.f32 0.0, %v1194
        %v1196 = vpop.f32.mrf.mxu0
        %1197 = vmatprep.mubr.bf16.mxu0 0
        %1198 = vmatmul.mubr.bf16.gmra.mxu0 %v1055
        %v1199 = vpop.f32.mrf.mxu0
        %v1200 = vadd.f32 0.0, %v1199
        %v1201 = vpop.f32.mrf.mxu0
        %v1202 = vpop.f32.mrf.mxu0
        %v1203 = vadd.f32 0.0, %v1202
        %v1204 = vpop.f32.mrf.mxu0
        %1205 = vmatprep.mubr.bf16.mxu0 0
        %1206 = vmatmul.mubr.bf16.gmra.mxu0 %v1056
        %v1207 = vpop.f32.mrf.mxu0
        %v1208 = vadd.f32 0.0, %v1207
        %v1209 = vpop.f32.mrf.mxu0
        %v1210 = vpop.f32.mrf.mxu0
        %v1211 = vadd.f32 0.0, %v1210
        %v1212 = vpop.f32.mrf.mxu0
        %1213 = vmatprep.mubr.bf16.mxu0 0
        %1214 = vmatmul.mubr.bf16.gmra.mxu0 %v1057
        %v1215 = vpop.f32.mrf.mxu0
        %v1216 = vadd.f32 0.0, %v1215
        %v1217 = vpop.f32.mrf.mxu0
        %v1218 = vpop.f32.mrf.mxu0
        %v1219 = vadd.f32 0.0, %v1218
        %v1220 = vpop.f32.mrf.mxu0
        %1221 = vmatprep.mubr.bf16.mxu0 0
        %1222 = vmatmul.mubr.bf16.gmra.mxu0 %v1058
        %v1223 = vpop.f32.mrf.mxu0
        %v1224 = vadd.f32 0.0, %v1223
        %v1225 = vpop.f32.mrf.mxu0
        %v1226 = vpop.f32.mrf.mxu0
        %v1227 = vadd.f32 0.0, %v1226
        %v1228 = vpop.f32.mrf.mxu0
        %1229 = vmatprep.mubr.bf16.mxu0 0
        %1230 = vmatmul.mubr.bf16.gmra.mxu0 %v1059
        %v1231 = vpop.f32.mrf.mxu0
        %v1232 = vadd.f32 0.0, %v1231
        %v1233 = vpop.f32.mrf.mxu0
        %v1234 = vpop.f32.mrf.mxu0
        %v1235 = vadd.f32 0.0, %v1234
        %v1236 = vpop.f32.mrf.mxu0
        %1237 = vdwg.mxu0
        %v1238 = vunpack.c.l.b16 %v1060
        %v1239 = vunpack.c.l.b16 %v1062
        %v1240 = vunpack.c.l.b16 %v1064
        %v1241 = vunpack.c.l.b16 %v1066
        %v1242 = vunpack.c.l.b16 %v1068
        %v1243 = vunpack.c.l.b16 %v1070
        %v1244 = vunpack.c.l.b16 %v1072
        %v1245 = vunpack.c.l.b16 %v1074
        %v1246 = vunpack.c.l.b16 %v1076
        %v1247 = vunpack.c.l.b16 %v1078
        %v1248 = vunpack.c.l.b16 %v1080
        %v1249 = vunpack.c.l.b16 %v1082
        %v1250 = vunpack.c.l.b16 %v1084
        %v1251 = vunpack.c.l.b16 %v1086
        %v1252 = vunpack.c.l.b16 %v1088
        %v1253 = vunpack.c.l.b16 %v1090
        %v1254 = vpack.c.b16 %v1239, %v1238
        %v1255 = vpack.c.b16 %v1241, %v1240
        %v1256 = vpack.c.b16 %v1243, %v1242
        %v1257 = vpack.c.b16 %v1245, %v1244
        %v1258 = vpack.c.b16 %v1247, %v1246
        %v1259 = vpack.c.b16 %v1249, %v1248
        %v1260 = vpack.c.b16 %v1251, %v1250
        %v1261 = vpack.c.b16 %v1253, %v1252
        %1270 = vmatprep.subr.bf16.mxu0 0
        %1271 = vmatpush1.bf16.msra.mxu0 %v1261
        %1272 = vmatprep.subr.bf16.mxu0 0
        %1273 = vmatpush1.bf16.msra.mxu0 %v1260
        %1274 = vmatprep.subr.bf16.mxu0 0
        %1275 = vmatpush1.bf16.msra.mxu0 %v1259
        %1276 = vmatprep.subr.bf16.mxu0 0
        %1277 = vmatpush1.bf16.msra.mxu0 %v1258
        %1278 = vmatprep.subr.bf16.mxu0 0
        %1279 = vmatpush1.bf16.msra.mxu0 %v1257
        %1280 = vmatprep.subr.bf16.mxu0 0
        %1281 = vmatpush1.bf16.msra.mxu0 %v1256
        %1282 = vmatprep.subr.bf16.mxu0 0
        %1283 = vmatpush1.bf16.msra.mxu0 %v1255
        %1284 = vmatprep.subr.bf16.mxu0 0
        %1285 = vmatpush1.bf16.msra.mxu0 %v1254
        %1286 = vmatprep.subr.bf16.mxu0 0
        %1287 = vmatpush2.bf16.msra.mxu0 0
        %1288 = vmatprep.subr.bf16.mxu0 0
        %1289 = vmatpush2.bf16.msra.mxu0 0
        %1290 = vmatprep.subr.bf16.mxu0 0
        %1291 = vmatpush2.bf16.msra.mxu0 0
        %1292 = vmatprep.subr.bf16.mxu0 0
        %1293 = vmatpush2.bf16.msra.mxu0 0
        %1294 = vmatprep.subr.bf16.mxu0 0
        %1295 = vmatpush2.bf16.msra.mxu0 0
        %1296 = vmatprep.subr.bf16.mxu0 0
        %1297 = vmatpush2.bf16.msra.mxu0 0
        %1298 = vmatprep.subr.bf16.mxu0 0
        %1299 = vmatpush2.bf16.msra.mxu0 0
        %1300 = vmatprep.subr.bf16.mxu0 0
        %1301 = vmatpush2.bf16.msra.mxu0 0
        %1302 = vmatprep.mubr.bf16.mxu0 0
        %1303 = vmatmul.mubr.bf16.gmra.mxu0 %v1052
        %v1304 = vpop.f32.mrf.mxu0
        %v1305 = vadd.f32 0.0, %v1304
        %v1306 = vpop.f32.mrf.mxu0
        %v1307 = vpop.f32.mrf.mxu0
        %v1308 = vadd.f32 0.0, %v1307
        %v1309 = vpop.f32.mrf.mxu0
        %1310 = vmatprep.mubr.bf16.mxu0 0
        %1311 = vmatmul.mubr.bf16.gmra.mxu0 %v1053
        %v1312 = vpop.f32.mrf.mxu0
        %v1313 = vadd.f32 0.0, %v1312
        %v1314 = vpop.f32.mrf.mxu0
        %v1315 = vpop.f32.mrf.mxu0
        %v1316 = vadd.f32 0.0, %v1315
        %v1317 = vpop.f32.mrf.mxu0
        %1318 = vmatprep.mubr.bf16.mxu0 0
        %1319 = vmatmul.mubr.bf16.gmra.mxu0 %v1054
        %v1320 = vpop.f32.mrf.mxu0
        %v1321 = vadd.f32 0.0, %v1320
        %v1322 = vpop.f32.mrf.mxu0
        %v1323 = vpop.f32.mrf.mxu0
        %v1324 = vadd.f32 0.0, %v1323
        %v1325 = vpop.f32.mrf.mxu0
        %1326 = vmatprep.mubr.bf16.mxu0 0
        %1327 = vmatmul.mubr.bf16.gmra.mxu0 %v1055
        %v1328 = vpop.f32.mrf.mxu0
        %v1329 = vadd.f32 0.0, %v1328
        %v1330 = vpop.f32.mrf.mxu0
        %v1331 = vpop.f32.mrf.mxu0
        %v1332 = vadd.f32 0.0, %v1331
        %v1333 = vpop.f32.mrf.mxu0
        %1334 = vmatprep.mubr.bf16.mxu0 0
        %1335 = vmatmul.mubr.bf16.gmra.mxu0 %v1056
        %v1336 = vpop.f32.mrf.mxu0
        %v1337 = vadd.f32 0.0, %v1336
        %v1338 = vpop.f32.mrf.mxu0
        %v1339 = vpop.f32.mrf.mxu0
        %v1340 = vadd.f32 0.0, %v1339
        %v1341 = vpop.f32.mrf.mxu0
        %1342 = vmatprep.mubr.bf16.mxu0 0
        %1343 = vmatmul.mubr.bf16.gmra.mxu0 %v1057
        %v1344 = vpop.f32.mrf.mxu0
        %v1345 = vadd.f32 0.0, %v1344
        %v1346 = vpop.f32.mrf.mxu0
        %v1347 = vpop.f32.mrf.mxu0
        %v1348 = vadd.f32 0.0, %v1347
        %v1349 = vpop.f32.mrf.mxu0
        %1350 = vmatprep.mubr.bf16.mxu0 0
        %1351 = vmatmul.mubr.bf16.gmra.mxu0 %v1058
        %v1352 = vpop.f32.mrf.mxu0
        %v1353 = vadd.f32 0.0, %v1352
        %v1354 = vpop.f32.mrf.mxu0
        %v1355 = vpop.f32.mrf.mxu0
        %v1356 = vadd.f32 0.0, %v1355
        %v1357 = vpop.f32.mrf.mxu0
        %1358 = vdwg.mxu0
        %v1375 = vunpack.c.l.b16 %v1061
        %v1376 = vunpack.c.l.b16 %v1063
        %v1377 = vunpack.c.l.b16 %v1065
        %v1378 = vunpack.c.l.b16 %v1067
        %v1379 = vunpack.c.l.b16 %v1069
        %v1380 = vunpack.c.l.b16 %v1071
        %v1381 = vunpack.c.l.b16 %v1073
        %v1382 = vunpack.c.l.b16 %v1075
        %v1383 = vunpack.c.l.b16 %v1077
        %v1384 = vunpack.c.l.b16 %v1079
        %v1385 = vunpack.c.l.b16 %v1081
        %v1386 = vunpack.c.l.b16 %v1083
        %v1387 = vunpack.c.l.b16 %v1085
        %v1388 = vunpack.c.l.b16 %v1087
        %v1389 = vunpack.c.l.b16 %v1089
        %v1390 = vunpack.c.l.b16 %v1091
        %v1391 = vpack.c.b16 %v1376, %v1375
        %v1392 = vpack.c.b16 %v1378, %v1377
        %v1393 = vpack.c.b16 %v1380, %v1379
        %v1394 = vpack.c.b16 %v1382, %v1381
        %v1395 = vpack.c.b16 %v1384, %v1383
        %v1396 = vpack.c.b16 %v1386, %v1385
        %v1397 = vpack.c.b16 %v1388, %v1387
        %v1398 = vpack.c.b16 %v1390, %v1389
        %1407 = vmatprep.subr.bf16.mxu0 0
        %1408 = vmatpush1.bf16.msra.mxu0 %v1398
        %1409 = vmatprep.subr.bf16.mxu0 0
        %1410 = vmatpush1.bf16.msra.mxu0 %v1397
        %1411 = vmatprep.subr.bf16.mxu0 0
        %1412 = vmatpush1.bf16.msra.mxu0 %v1396
        %1413 = vmatprep.subr.bf16.mxu0 0
        %1414 = vmatpush1.bf16.msra.mxu0 %v1395
        %1415 = vmatprep.subr.bf16.mxu0 0
        %1416 = vmatpush1.bf16.msra.mxu0 %v1394
        %1417 = vmatprep.subr.bf16.mxu0 0
        %1418 = vmatpush1.bf16.msra.mxu0 %v1393
        %1419 = vmatprep.subr.bf16.mxu0 0
        %1420 = vmatpush1.bf16.msra.mxu0 %v1392
        %1421 = vmatprep.subr.bf16.mxu0 0
        %1422 = vmatpush1.bf16.msra.mxu0 %v1391
        %1423 = vmatprep.subr.bf16.mxu0 0
        %1424 = vmatpush2.bf16.msra.mxu0 0
        %1425 = vmatprep.subr.bf16.mxu0 0
        %1426 = vmatpush2.bf16.msra.mxu0 0
        %1427 = vmatprep.subr.bf16.mxu0 0
        %1428 = vmatpush2.bf16.msra.mxu0 0
        %1429 = vmatprep.subr.bf16.mxu0 0
        %1430 = vmatpush2.bf16.msra.mxu0 0
        %1431 = vmatprep.subr.bf16.mxu0 0
        %1432 = vmatpush2.bf16.msra.mxu0 0
        %1433 = vmatprep.subr.bf16.mxu0 0
        %1434 = vmatpush2.bf16.msra.mxu0 0
        %1435 = vmatprep.subr.bf16.mxu0 0
        %1436 = vmatpush2.bf16.msra.mxu0 0
        %1437 = vmatprep.subr.bf16.mxu0 0
        %1438 = vmatpush2.bf16.msra.mxu0 0
        %1439 = vmatprep.mubr.bf16.mxu0 0
        %1440 = vmatmul.mubr.bf16.gmra.mxu0 %v1053
        %v1441 = vpop.f32.mrf.mxu0
        %v1442 = vadd.f32 0.0, %v1441
        %v1443 = vpop.f32.mrf.mxu0
        %v1444 = vpop.f32.mrf.mxu0
        %v1445 = vadd.f32 0.0, %v1444
        %v1446 = vpop.f32.mrf.mxu0
        %1447 = vmatprep.mubr.bf16.mxu0 0
        %1448 = vmatmul.mubr.bf16.gmra.mxu0 %v1054
        %v1449 = vpop.f32.mrf.mxu0
        %v1450 = vadd.f32 0.0, %v1449
        %v1451 = vpop.f32.mrf.mxu0
        %v1452 = vpop.f32.mrf.mxu0
        %v1453 = vadd.f32 0.0, %v1452
        %v1454 = vpop.f32.mrf.mxu0
        %1455 = vmatprep.mubr.bf16.mxu0 0
        %1456 = vmatmul.mubr.bf16.gmra.mxu0 %v1055
        %v1457 = vpop.f32.mrf.mxu0
        %v1458 = vadd.f32 0.0, %v1457
        %v1459 = vpop.f32.mrf.mxu0
        %v1460 = vpop.f32.mrf.mxu0
        %v1461 = vadd.f32 0.0, %v1460
        %v1462 = vpop.f32.mrf.mxu0
        %1463 = vmatprep.mubr.bf16.mxu0 0
        %1464 = vmatmul.mubr.bf16.gmra.mxu0 %v1056
        %v1465 = vpop.f32.mrf.mxu0
        %v1466 = vadd.f32 0.0, %v1465
        %v1467 = vpop.f32.mrf.mxu0
        %v1468 = vpop.f32.mrf.mxu0
        %v1469 = vadd.f32 0.0, %v1468
        %v1470 = vpop.f32.mrf.mxu0
        %1471 = vmatprep.mubr.bf16.mxu0 0
        %1472 = vmatmul.mubr.bf16.gmra.mxu0 %v1057
        %v1473 = vpop.f32.mrf.mxu0
        %v1474 = vadd.f32 0.0, %v1473
        %v1475 = vpop.f32.mrf.mxu0
        %v1476 = vpop.f32.mrf.mxu0
        %v1477 = vadd.f32 0.0, %v1476
        %v1478 = vpop.f32.mrf.mxu0
        %1479 = vmatprep.mubr.bf16.mxu0 0
        %1480 = vmatmul.mubr.bf16.gmra.mxu0 %v1058
        %v1481 = vpop.f32.mrf.mxu0
        %v1482 = vadd.f32 0.0, %v1481
        %v1483 = vpop.f32.mrf.mxu0
        %v1484 = vpop.f32.mrf.mxu0
        %v1485 = vadd.f32 0.0, %v1484
        %v1486 = vpop.f32.mrf.mxu0
        %1487 = vmatprep.mubr.bf16.mxu0 0
        %1488 = vmatmul.mubr.bf16.gmra.mxu0 %v1059
        %v1489 = vpop.f32.mrf.mxu0
        %v1490 = vadd.f32 0.0, %v1489
        %v1491 = vpop.f32.mrf.mxu0
        %v1492 = vpop.f32.mrf.mxu0
        %v1493 = vadd.f32 0.0, %v1492
        %v1494 = vpop.f32.mrf.mxu0
        %1495 = vdwg.mxu0
        %v1496 = vadd.f32 %v1176, %v1442
        %v1497 = vadd.f32 %v1179, %v1445
        %v1499 = vlaneseq
        %v1500 = vshrl.u32 %v1499, 7
        %v1501 = vsub.s32 0, %v1500
        %v1502 = vrot.slane %v1092, %v1501
        %v1504 = vadd.f32 %v1496, %v1502
        %v1505 = vadd.f32 %v1497, %v1502
        %v1506 = vmax.f32 %v1504, 0.0
        %v1507 = vmax.f32 %v1505, 0.0
        %1508 = vst [vmem:[%s514] sm:$0xff] %v1506
        %1509 = vst [vmem:[%s514 + $0x8] sm:$0xff] %v1507
        %v1510 = vadd.f32 %v1184, %v1305
        %v1511 = vadd.f32 %v1187, %v1308
        %v1512 = vadd.f32 %v1192, %v1313
        %v1513 = vadd.f32 %v1195, %v1316
        %v1514 = vadd.f32 %v1200, %v1321
        %v1515 = vadd.f32 %v1203, %v1324
        %v1516 = vadd.f32 %v1208, %v1329
        %v1517 = vadd.f32 %v1211, %v1332
        %v1518 = vadd.f32 %v1216, %v1337
        %v1519 = vadd.f32 %v1219, %v1340
        %v1520 = vadd.f32 %v1224, %v1345
        %v1521 = vadd.f32 %v1227, %v1348
        %v1522 = vadd.f32 %v1510, %v1450
        %v1523 = vadd.f32 %v1511, %v1453
        %v1524 = vadd.f32 %v1512, %v1458
        %v1525 = vadd.f32 %v1513, %v1461
        %v1526 = vadd.f32 %v1514, %v1466
        %v1527 = vadd.f32 %v1515, %v1469
        %v1528 = vadd.f32 %v1516, %v1474
        %v1529 = vadd.f32 %v1517, %v1477
        %v1530 = vadd.f32 %v1518, %v1482
        %v1531 = vadd.f32 %v1519, %v1485
        %v1532 = vadd.f32 %v1520, %v1490
        %v1533 = vadd.f32 %v1521, %v1493
        %v1534 = vadd.f32 %v1522, %v1502
        %v1535 = vadd.f32 %v1523, %v1502
        %v1536 = vadd.f32 %v1524, %v1502
        %v1537 = vadd.f32 %v1525, %v1502
        %v1538 = vadd.f32 %v1526, %v1502
        %v1539 = vadd.f32 %v1527, %v1502
        %v1540 = vadd.f32 %v1528, %v1502
        %v1541 = vadd.f32 %v1529, %v1502
        %v1542 = vadd.f32 %v1530, %v1502
        %v1543 = vadd.f32 %v1531, %v1502
        %v1544 = vadd.f32 %v1532, %v1502
        %v1545 = vadd.f32 %v1533, %v1502
        %v1546 = vmax.f32 %v1534, 0.0
        %v1547 = vmax.f32 %v1535, 0.0
        %v1548 = vmax.f32 %v1536, 0.0
        %v1549 = vmax.f32 %v1537, 0.0
        %v1550 = vmax.f32 %v1538, 0.0
        %v1551 = vmax.f32 %v1539, 0.0
        %v1552 = vmax.f32 %v1540, 0.0
        %v1553 = vmax.f32 %v1541, 0.0
        %v1554 = vmax.f32 %v1542, 0.0
        %v1555 = vmax.f32 %v1543, 0.0
        %v1556 = vmax.f32 %v1544, 0.0
        %v1557 = vmax.f32 %v1545, 0.0
        %s1558 = scalar_lea.vmem %s514, 16
        %1559 = vst [vmem:[%s1558] sm:$0xff] %v1546
        %1560 = vst [vmem:[%s1558 + $0x8] sm:$0xff] %v1547
        %1561 = vst [vmem:[%s1558 + $0x10] sm:$0xff] %v1548
        %1562 = vst [vmem:[%s1558 + $0x18] sm:$0xff] %v1549
        %1563 = vst [vmem:[%s1558 + $0x20] sm:$0xff] %v1550
        %1564 = vst [vmem:[%s1558 + $0x28] sm:$0xff] %v1551
        %1565 = vst [vmem:[%s1558 + $0x30] sm:$0xff] %v1552
        %1566 = vst [vmem:[%s1558 + $0x38] sm:$0xff] %v1553
        %1567 = vst [vmem:[%s1558 + $0x40] sm:$0xff] %v1554
        %1568 = vst [vmem:[%s1558 + $0x48] sm:$0xff] %v1555
        %1569 = vst [vmem:[%s1558 + $0x50] sm:$0xff] %v1556
        %1570 = vst [vmem:[%s1558 + $0x58] sm:$0xff] %v1557
        %v1571 = vadd.f32 %v1232, %v1353
        %v1572 = vadd.f32 %v1235, %v1356
        %v1573 = vadd.f32 %v1571, %v1502
        %v1574 = vadd.f32 %v1572, %v1502
        %v1575 = vmax.f32 %v1573, 0.0
        %v1576 = vmax.f32 %v1574, 0.0
        %s1577 = scalar_lea.vmem %s514, 112
        %1578 = vst [vmem:[%s1577] sm:$0xff] %v1575
        %1579 = vst [vmem:[%s1577 + $0x8] sm:$0xff] %v1576
        %v1580 = vpack.c.bf16 %v993, %v990
        %v1581 = vpack.c.bf16 %v999, %v996
        %v1582 = vpack.c.bf16 %v1005, %v1002
        %v1583 = vpack.c.bf16 %v1011, %v1008
        %v1584 = vpack.c.bf16 %v1017, %v1014
        %v1585 = vpack.c.bf16 %v1023, %v1020
        %v1586 = vpack.c.bf16 %v1029, %v1026
        %v1587 = vpack.c.bf16 %v1035, %v1032
        %v1588 = vld [vmem:[%s5] sm:$0xff]
        %v1589 = vld [vmem:[%s5 + $0x8] sm:$0xf]
        %v1590 = vld [vmem:[%s5 + $0xc] sm:$0xff]
        %v1591 = vld [vmem:[%s5 + $0x14] sm:$0xf]
        %v1592 = vld [vmem:[%s5 + $0x18] sm:$0xff]
        %v1593 = vld [vmem:[%s5 + $0x20] sm:$0xf]
        %v1594 = vld [vmem:[%s5 + $0x24] sm:$0xff]
        %v1595 = vld [vmem:[%s5 + $0x2c] sm:$0xf]
        %v1596 = vld [vmem:[%s5 + $0x30] sm:$0xff]
        %v1597 = vld [vmem:[%s5 + $0x38] sm:$0xf]
        %v1598 = vld [vmem:[%s5 + $0x3c] sm:$0xff]
        %v1599 = vld [vmem:[%s5 + $0x44] sm:$0xf]
        %v1600 = vld [vmem:[%s5 + $0x48] sm:$0xff]
        %v1601 = vld [vmem:[%s5 + $0x50] sm:$0xf]
        %v1602 = vld [vmem:[%s5 + $0x54] sm:$0xff]
        %v1603 = vld [vmem:[%s5 + $0x5c] sm:$0xf]
        %v1604 = vld [vmem:[%s5 + $0x60] sm:$0xff]
        %v1605 = vld [vmem:[%s5 + $0x68] sm:$0xf]
        %v1606 = vld [vmem:[%s5 + $0x6c] sm:$0xff]
        %v1607 = vld [vmem:[%s5 + $0x74] sm:$0xf]
        %v1608 = vld [vmem:[%s5 + $0x78] sm:$0xff]
        %v1609 = vld [vmem:[%s5 + $0x80] sm:$0xf]
        %v1610 = vld [vmem:[%s5 + $0x84] sm:$0xff]
        %v1611 = vld [vmem:[%s5 + $0x8c] sm:$0xf]
        %v1612 = vld [vmem:[%s5 + $0x90] sm:$0xff]
        %v1613 = vld [vmem:[%s5 + $0x98] sm:$0xf]
        %v1614 = vld [vmem:[%s5 + $0x9c] sm:$0xff]
        %v1615 = vld [vmem:[%s5 + $0xa4] sm:$0xf]
        %v1616 = vld [vmem:[%s5 + $0xa8] sm:$0xff]
        %v1617 = vld [vmem:[%s5 + $0xb0] sm:$0xf]
        %v1618 = vld [vmem:[%s5 + $0xb4] sm:$0xff]
        %v1619 = vld [vmem:[%s5 + $0xbc] sm:$0xf]
        %v1620 = vld [vmem:[%s6] sm:$0x1]
        %v1637 = vunpack.c.h.b16 %v1588
        %v1638 = vunpack.c.h.b16 %v1590
        %v1639 = vunpack.c.h.b16 %v1592
        %v1640 = vunpack.c.h.b16 %v1594
        %v1641 = vunpack.c.h.b16 %v1596
        %v1642 = vunpack.c.h.b16 %v1598
        %v1643 = vunpack.c.h.b16 %v1600
        %v1644 = vunpack.c.h.b16 %v1602
        %v1645 = vunpack.c.h.b16 %v1604
        %v1646 = vunpack.c.h.b16 %v1606
        %v1647 = vunpack.c.h.b16 %v1608
        %v1648 = vunpack.c.h.b16 %v1610
        %v1649 = vunpack.c.h.b16 %v1612
        %v1650 = vunpack.c.h.b16 %v1614
        %v1651 = vunpack.c.h.b16 %v1616
        %v1652 = vunpack.c.h.b16 %v1618
        %v1653 = vpack.c.b16 %v1638, %v1637
        %v1654 = vpack.c.b16 %v1640, %v1639
        %v1655 = vpack.c.b16 %v1642, %v1641
        %v1656 = vpack.c.b16 %v1644, %v1643
        %v1657 = vpack.c.b16 %v1646, %v1645
        %v1658 = vpack.c.b16 %v1648, %v1647
        %v1659 = vpack.c.b16 %v1650, %v1649
        %v1660 = vpack.c.b16 %v1652, %v1651
        %1669 = vmatprep.subr.bf16.mxu0 0
        %1670 = vmatpush1.bf16.msra.mxu0 %v1660
        %1671 = vmatprep.subr.bf16.mxu0 0
        %1672 = vmatpush1.bf16.msra.mxu0 %v1659
        %1673 = vmatprep.subr.bf16.mxu0 0
        %1674 = vmatpush1.bf16.msra.mxu0 %v1658
        %1675 = vmatprep.subr.bf16.mxu0 0
        %1676 = vmatpush1.bf16.msra.mxu0 %v1657
        %1677 = vmatprep.subr.bf16.mxu0 0
        %1678 = vmatpush1.bf16.msra.mxu0 %v1656
        %1679 = vmatprep.subr.bf16.mxu0 0
        %1680 = vmatpush1.bf16.msra.mxu0 %v1655
        %1681 = vmatprep.subr.bf16.mxu0 0
        %1682 = vmatpush1.bf16.msra.mxu0 %v1654
        %1683 = vmatprep.subr.bf16.mxu0 0
        %1684 = vmatpush1.bf16.msra.mxu0 %v1653
        %1685 = vmatprep.subr.bf16.mxu0 0
        %1686 = vmatpush2.bf16.msra.mxu0 0
        %1687 = vmatprep.subr.bf16.mxu0 0
        %1688 = vmatpush2.bf16.msra.mxu0 0
        %1689 = vmatprep.subr.bf16.mxu0 0
        %1690 = vmatpush2.bf16.msra.mxu0 0
        %1691 = vmatprep.subr.bf16.mxu0 0
        %1692 = vmatpush2.bf16.msra.mxu0 0
        %1693 = vmatprep.subr.bf16.mxu0 0
        %1694 = vmatpush2.bf16.msra.mxu0 0
        %1695 = vmatprep.subr.bf16.mxu0 0
        %1696 = vmatpush2.bf16.msra.mxu0 0
        %1697 = vmatprep.subr.bf16.mxu0 0
        %1698 = vmatpush2.bf16.msra.mxu0 0
        %1699 = vmatprep.subr.bf16.mxu0 0
        %1700 = vmatpush2.bf16.msra.mxu0 0
        %1701 = vmatprep.mubr.bf16.mxu0 0
        %1702 = vmatmul.mubr.bf16.gmra.mxu0 %v1580
        %v1703 = vpop.f32.mrf.mxu0
        %v1704 = vadd.f32 0.0, %v1703
        %v1705 = vpop.f32.mrf.mxu0
        %v1706 = vpop.f32.mrf.mxu0
        %v1707 = vadd.f32 0.0, %v1706
        %v1708 = vpop.f32.mrf.mxu0
        %1709 = vmatprep.mubr.bf16.mxu0 0
        %1710 = vmatmul.mubr.bf16.gmra.mxu0 %v1581
        %v1711 = vpop.f32.mrf.mxu0
        %v1712 = vadd.f32 0.0, %v1711
        %v1713 = vpop.f32.mrf.mxu0
        %v1714 = vpop.f32.mrf.mxu0
        %v1715 = vadd.f32 0.0, %v1714
        %v1716 = vpop.f32.mrf.mxu0
        %1717 = vmatprep.mubr.bf16.mxu0 0
        %1718 = vmatmul.mubr.bf16.gmra.mxu0 %v1582
        %v1719 = vpop.f32.mrf.mxu0
        %v1720 = vadd.f32 0.0, %v1719
        %v1721 = vpop.f32.mrf.mxu0
        %v1722 = vpop.f32.mrf.mxu0
        %v1723 = vadd.f32 0.0, %v1722
        %v1724 = vpop.f32.mrf.mxu0
        %1725 = vmatprep.mubr.bf16.mxu0 0
        %1726 = vmatmul.mubr.bf16.gmra.mxu0 %v1583
        %v1727 = vpop.f32.mrf.mxu0
        %v1728 = vadd.f32 0.0, %v1727
        %v1729 = vpop.f32.mrf.mxu0
        %v1730 = vpop.f32.mrf.mxu0
        %v1731 = vadd.f32 0.0, %v1730
        %v1732 = vpop.f32.mrf.mxu0
        %1733 = vmatprep.mubr.bf16.mxu0 0
        %1734 = vmatmul.mubr.bf16.gmra.mxu0 %v1584
        %v1735 = vpop.f32.mrf.mxu0
        %v1736 = vadd.f32 0.0, %v1735
        %v1737 = vpop.f32.mrf.mxu0
        %v1738 = vpop.f32.mrf.mxu0
        %v1739 = vadd.f32 0.0, %v1738
        %v1740 = vpop.f32.mrf.mxu0
        %1741 = vmatprep.mubr.bf16.mxu0 0
        %1742 = vmatmul.mubr.bf16.gmra.mxu0 %v1585
        %v1743 = vpop.f32.mrf.mxu0
        %v1744 = vadd.f32 0.0, %v1743
        %v1745 = vpop.f32.mrf.mxu0
        %v1746 = vpop.f32.mrf.mxu0
        %v1747 = vadd.f32 0.0, %v1746
        %v1748 = vpop.f32.mrf.mxu0
        %1749 = vmatprep.mubr.bf16.mxu0 0
        %1750 = vmatmul.mubr.bf16.gmra.mxu0 %v1586
        %v1751 = vpop.f32.mrf.mxu0
        %v1752 = vadd.f32 0.0, %v1751
        %v1753 = vpop.f32.mrf.mxu0
        %v1754 = vpop.f32.mrf.mxu0
        %v1755 = vadd.f32 0.0, %v1754
        %v1756 = vpop.f32.mrf.mxu0
        %1757 = vmatprep.mubr.bf16.mxu0 0
        %1758 = vmatmul.mubr.bf16.gmra.mxu0 %v1587
        %v1759 = vpop.f32.mrf.mxu0
        %v1760 = vadd.f32 0.0, %v1759
        %v1761 = vpop.f32.mrf.mxu0
        %v1762 = vpop.f32.mrf.mxu0
        %v1763 = vadd.f32 0.0, %v1762
        %v1764 = vpop.f32.mrf.mxu0
        %1765 = vdwg.mxu0
        %v1766 = vunpack.c.l.b16 %v1588
        %v1767 = vunpack.c.l.b16 %v1590
        %v1768 = vunpack.c.l.b16 %v1592
        %v1769 = vunpack.c.l.b16 %v1594
        %v1770 = vunpack.c.l.b16 %v1596
        %v1771 = vunpack.c.l.b16 %v1598
        %v1772 = vunpack.c.l.b16 %v1600
        %v1773 = vunpack.c.l.b16 %v1602
        %v1774 = vunpack.c.l.b16 %v1604
        %v1775 = vunpack.c.l.b16 %v1606
        %v1776 = vunpack.c.l.b16 %v1608
        %v1777 = vunpack.c.l.b16 %v1610
        %v1778 = vunpack.c.l.b16 %v1612
        %v1779 = vunpack.c.l.b16 %v1614
        %v1780 = vunpack.c.l.b16 %v1616
        %v1781 = vunpack.c.l.b16 %v1618
        %v1782 = vpack.c.b16 %v1767, %v1766
        %v1783 = vpack.c.b16 %v1769, %v1768
        %v1784 = vpack.c.b16 %v1771, %v1770
        %v1785 = vpack.c.b16 %v1773, %v1772
        %v1786 = vpack.c.b16 %v1775, %v1774
        %v1787 = vpack.c.b16 %v1777, %v1776
        %v1788 = vpack.c.b16 %v1779, %v1778
        %v1789 = vpack.c.b16 %v1781, %v1780
        %1798 = vmatprep.subr.bf16.mxu0 0
        %1799 = vmatpush1.bf16.msra.mxu0 %v1789
        %1800 = vmatprep.subr.bf16.mxu0 0
        %1801 = vmatpush1.bf16.msra.mxu0 %v1788
        %1802 = vmatprep.subr.bf16.mxu0 0
        %1803 = vmatpush1.bf16.msra.mxu0 %v1787
        %1804 = vmatprep.subr.bf16.mxu0 0
        %1805 = vmatpush1.bf16.msra.mxu0 %v1786
        %1806 = vmatprep.subr.bf16.mxu0 0
        %1807 = vmatpush1.bf16.msra.mxu0 %v1785
        %1808 = vmatprep.subr.bf16.mxu0 0
        %1809 = vmatpush1.bf16.msra.mxu0 %v1784
        %1810 = vmatprep.subr.bf16.mxu0 0
        %1811 = vmatpush1.bf16.msra.mxu0 %v1783
        %1812 = vmatprep.subr.bf16.mxu0 0
        %1813 = vmatpush1.bf16.msra.mxu0 %v1782
        %1814 = vmatprep.subr.bf16.mxu0 0
        %1815 = vmatpush2.bf16.msra.mxu0 0
        %1816 = vmatprep.subr.bf16.mxu0 0
        %1817 = vmatpush2.bf16.msra.mxu0 0
        %1818 = vmatprep.subr.bf16.mxu0 0
        %1819 = vmatpush2.bf16.msra.mxu0 0
        %1820 = vmatprep.subr.bf16.mxu0 0
        %1821 = vmatpush2.bf16.msra.mxu0 0
        %1822 = vmatprep.subr.bf16.mxu0 0
        %1823 = vmatpush2.bf16.msra.mxu0 0
        %1824 = vmatprep.subr.bf16.mxu0 0
        %1825 = vmatpush2.bf16.msra.mxu0 0
        %1826 = vmatprep.subr.bf16.mxu0 0
        %1827 = vmatpush2.bf16.msra.mxu0 0
        %1828 = vmatprep.subr.bf16.mxu0 0
        %1829 = vmatpush2.bf16.msra.mxu0 0
        %1830 = vmatprep.mubr.bf16.mxu0 0
        %1831 = vmatmul.mubr.bf16.gmra.mxu0 %v1580
        %v1832 = vpop.f32.mrf.mxu0
        %v1833 = vadd.f32 0.0, %v1832
        %v1834 = vpop.f32.mrf.mxu0
        %v1835 = vpop.f32.mrf.mxu0
        %v1836 = vadd.f32 0.0, %v1835
        %v1837 = vpop.f32.mrf.mxu0
        %1838 = vmatprep.mubr.bf16.mxu0 0
        %1839 = vmatmul.mubr.bf16.gmra.mxu0 %v1581
        %v1840 = vpop.f32.mrf.mxu0
        %v1841 = vadd.f32 0.0, %v1840
        %v1842 = vpop.f32.mrf.mxu0
        %v1843 = vpop.f32.mrf.mxu0
        %v1844 = vadd.f32 0.0, %v1843
        %v1845 = vpop.f32.mrf.mxu0
        %1846 = vmatprep.mubr.bf16.mxu0 0
        %1847 = vmatmul.mubr.bf16.gmra.mxu0 %v1582
        %v1848 = vpop.f32.mrf.mxu0
        %v1849 = vadd.f32 0.0, %v1848
        %v1850 = vpop.f32.mrf.mxu0
        %v1851 = vpop.f32.mrf.mxu0
        %v1852 = vadd.f32 0.0, %v1851
        %v1853 = vpop.f32.mrf.mxu0
        %1854 = vmatprep.mubr.bf16.mxu0 0
        %1855 = vmatmul.mubr.bf16.gmra.mxu0 %v1583
        %v1856 = vpop.f32.mrf.mxu0
        %v1857 = vadd.f32 0.0, %v1856
        %v1858 = vpop.f32.mrf.mxu0
        %v1859 = vpop.f32.mrf.mxu0
        %v1860 = vadd.f32 0.0, %v1859
        %v1861 = vpop.f32.mrf.mxu0
        %1862 = vmatprep.mubr.bf16.mxu0 0
        %1863 = vmatmul.mubr.bf16.gmra.mxu0 %v1584
        %v1864 = vpop.f32.mrf.mxu0
        %v1865 = vadd.f32 0.0, %v1864
        %v1866 = vpop.f32.mrf.mxu0
        %v1867 = vpop.f32.mrf.mxu0
        %v1868 = vadd.f32 0.0, %v1867
        %v1869 = vpop.f32.mrf.mxu0
        %1870 = vmatprep.mubr.bf16.mxu0 0
        %1871 = vmatmul.mubr.bf16.gmra.mxu0 %v1585
        %v1872 = vpop.f32.mrf.mxu0
        %v1873 = vadd.f32 0.0, %v1872
        %v1874 = vpop.f32.mrf.mxu0
        %v1875 = vpop.f32.mrf.mxu0
        %v1876 = vadd.f32 0.0, %v1875
        %v1877 = vpop.f32.mrf.mxu0
        %1878 = vmatprep.mubr.bf16.mxu0 0
        %1879 = vmatmul.mubr.bf16.gmra.mxu0 %v1586
        %v1880 = vpop.f32.mrf.mxu0
        %v1881 = vadd.f32 0.0, %v1880
        %v1882 = vpop.f32.mrf.mxu0
        %v1883 = vpop.f32.mrf.mxu0
        %v1884 = vadd.f32 0.0, %v1883
        %v1885 = vpop.f32.mrf.mxu0
        %1886 = vdwg.mxu0
        %v1903 = vunpack.c.l.b16 %v1589
        %v1904 = vunpack.c.l.b16 %v1591
        %v1905 = vunpack.c.l.b16 %v1593
        %v1906 = vunpack.c.l.b16 %v1595
        %v1907 = vunpack.c.l.b16 %v1597
        %v1908 = vunpack.c.l.b16 %v1599
        %v1909 = vunpack.c.l.b16 %v1601
        %v1910 = vunpack.c.l.b16 %v1603
        %v1911 = vunpack.c.l.b16 %v1605
        %v1912 = vunpack.c.l.b16 %v1607
        %v1913 = vunpack.c.l.b16 %v1609
        %v1914 = vunpack.c.l.b16 %v1611
        %v1915 = vunpack.c.l.b16 %v1613
        %v1916 = vunpack.c.l.b16 %v1615
        %v1917 = vunpack.c.l.b16 %v1617
        %v1918 = vunpack.c.l.b16 %v1619
        %v1919 = vpack.c.b16 %v1904, %v1903
        %v1920 = vpack.c.b16 %v1906, %v1905
        %v1921 = vpack.c.b16 %v1908, %v1907
        %v1922 = vpack.c.b16 %v1910, %v1909
        %v1923 = vpack.c.b16 %v1912, %v1911
        %v1924 = vpack.c.b16 %v1914, %v1913
        %v1925 = vpack.c.b16 %v1916, %v1915
        %v1926 = vpack.c.b16 %v1918, %v1917
        %1935 = vmatprep.subr.bf16.mxu0 0
        %1936 = vmatpush1.bf16.msra.mxu0 %v1926
        %1937 = vmatprep.subr.bf16.mxu0 0
        %1938 = vmatpush1.bf16.msra.mxu0 %v1925
        %1939 = vmatprep.subr.bf16.mxu0 0
        %1940 = vmatpush1.bf16.msra.mxu0 %v1924
        %1941 = vmatprep.subr.bf16.mxu0 0
        %1942 = vmatpush1.bf16.msra.mxu0 %v1923
        %1943 = vmatprep.subr.bf16.mxu0 0
        %1944 = vmatpush1.bf16.msra.mxu0 %v1922
        %1945 = vmatprep.subr.bf16.mxu0 0
        %1946 = vmatpush1.bf16.msra.mxu0 %v1921
        %1947 = vmatprep.subr.bf16.mxu0 0
        %1948 = vmatpush1.bf16.msra.mxu0 %v1920
        %1949 = vmatprep.subr.bf16.mxu0 0
        %1950 = vmatpush1.bf16.msra.mxu0 %v1919
        %1951 = vmatprep.subr.bf16.mxu0 0
        %1952 = vmatpush2.bf16.msra.mxu0 0
        %1953 = vmatprep.subr.bf16.mxu0 0
        %1954 = vmatpush2.bf16.msra.mxu0 0
        %1955 = vmatprep.subr.bf16.mxu0 0
        %1956 = vmatpush2.bf16.msra.mxu0 0
        %1957 = vmatprep.subr.bf16.mxu0 0
        %1958 = vmatpush2.bf16.msra.mxu0 0
        %1959 = vmatprep.subr.bf16.mxu0 0
        %1960 = vmatpush2.bf16.msra.mxu0 0
        %1961 = vmatprep.subr.bf16.mxu0 0
        %1962 = vmatpush2.bf16.msra.mxu0 0
        %1963 = vmatprep.subr.bf16.mxu0 0
        %1964 = vmatpush2.bf16.msra.mxu0 0
        %1965 = vmatprep.subr.bf16.mxu0 0
        %1966 = vmatpush2.bf16.msra.mxu0 0
        %1967 = vmatprep.mubr.bf16.mxu0 0
        %1968 = vmatmul.mubr.bf16.gmra.mxu0 %v1581
        %v1969 = vpop.f32.mrf.mxu0
        %v1970 = vadd.f32 0.0, %v1969
        %v1971 = vpop.f32.mrf.mxu0
        %v1972 = vpop.f32.mrf.mxu0
        %v1973 = vadd.f32 0.0, %v1972
        %v1974 = vpop.f32.mrf.mxu0
        %1975 = vmatprep.mubr.bf16.mxu0 0
        %1976 = vmatmul.mubr.bf16.gmra.mxu0 %v1582
        %v1977 = vpop.f32.mrf.mxu0
        %v1978 = vadd.f32 0.0, %v1977
        %v1979 = vpop.f32.mrf.mxu0
        %v1980 = vpop.f32.mrf.mxu0
        %v1981 = vadd.f32 0.0, %v1980
        %v1982 = vpop.f32.mrf.mxu0
        %1983 = vmatprep.mubr.bf16.mxu0 0
        %1984 = vmatmul.mubr.bf16.gmra.mxu0 %v1583
        %v1985 = vpop.f32.mrf.mxu0
        %v1986 = vadd.f32 0.0, %v1985
        %v1987 = vpop.f32.mrf.mxu0
        %v1988 = vpop.f32.mrf.mxu0
        %v1989 = vadd.f32 0.0, %v1988
        %v1990 = vpop.f32.mrf.mxu0
        %1991 = vmatprep.mubr.bf16.mxu0 0
        %1992 = vmatmul.mubr.bf16.gmra.mxu0 %v1584
        %v1993 = vpop.f32.mrf.mxu0
        %v1994 = vadd.f32 0.0, %v1993
        %v1995 = vpop.f32.mrf.mxu0
        %v1996 = vpop.f32.mrf.mxu0
        %v1997 = vadd.f32 0.0, %v1996
        %v1998 = vpop.f32.mrf.mxu0
        %1999 = vmatprep.mubr.bf16.mxu0 0
        %2000 = vmatmul.mubr.bf16.gmra.mxu0 %v1585
        %v2001 = vpop.f32.mrf.mxu0
        %v2002 = vadd.f32 0.0, %v2001
        %v2003 = vpop.f32.mrf.mxu0
        %v2004 = vpop.f32.mrf.mxu0
        %v2005 = vadd.f32 0.0, %v2004
        %v2006 = vpop.f32.mrf.mxu0
        %2007 = vmatprep.mubr.bf16.mxu0 0
        %2008 = vmatmul.mubr.bf16.gmra.mxu0 %v1586
        %v2009 = vpop.f32.mrf.mxu0
        %v2010 = vadd.f32 0.0, %v2009
        %v2011 = vpop.f32.mrf.mxu0
        %v2012 = vpop.f32.mrf.mxu0
        %v2013 = vadd.f32 0.0, %v2012
        %v2014 = vpop.f32.mrf.mxu0
        %2015 = vmatprep.mubr.bf16.mxu0 0
        %2016 = vmatmul.mubr.bf16.gmra.mxu0 %v1587
        %v2017 = vpop.f32.mrf.mxu0
        %v2018 = vadd.f32 0.0, %v2017
        %v2019 = vpop.f32.mrf.mxu0
        %v2020 = vpop.f32.mrf.mxu0
        %v2021 = vadd.f32 0.0, %v2020
        %v2022 = vpop.f32.mrf.mxu0
        %2023 = vdwg.mxu0
        %v2024 = vadd.f32 %v1704, %v1970
        %v2025 = vadd.f32 %v1707, %v1973
        %v2027 = vlaneseq
        %v2028 = vshrl.u32 %v2027, 7
        %v2029 = vsub.s32 0, %v2028
        %v2030 = vrot.slane %v1620, %v2029
        %v2032 = vadd.f32 %v2024, %v2030
        %v2033 = vadd.f32 %v2025, %v2030
        %v2034 = vmax.f32 %v2032, 0.0
        %v2035 = vmax.f32 %v2033, 0.0
        %2036 = vst [vmem:[%s524] sm:$0xff] %v2034
        %2037 = vst [vmem:[%s524 + $0x8] sm:$0xff] %v2035
        %v2038 = vadd.f32 %v1712, %v1833
        %v2039 = vadd.f32 %v1715, %v1836
        %v2040 = vadd.f32 %v1720, %v1841
        %v2041 = vadd.f32 %v1723, %v1844
        %v2042 = vadd.f32 %v1728, %v1849
        %v2043 = vadd.f32 %v1731, %v1852
        %v2044 = vadd.f32 %v1736, %v1857
        %v2045 = vadd.f32 %v1739, %v1860
        %v2046 = vadd.f32 %v1744, %v1865
        %v2047 = vadd.f32 %v1747, %v1868
        %v2048 = vadd.f32 %v1752, %v1873
        %v2049 = vadd.f32 %v1755, %v1876
        %v2050 = vadd.f32 %v2038, %v1978
        %v2051 = vadd.f32 %v2039, %v1981
        %v2052 = vadd.f32 %v2040, %v1986
        %v2053 = vadd.f32 %v2041, %v1989
        %v2054 = vadd.f32 %v2042, %v1994
        %v2055 = vadd.f32 %v2043, %v1997
        %v2056 = vadd.f32 %v2044, %v2002
        %v2057 = vadd.f32 %v2045, %v2005
        %v2058 = vadd.f32 %v2046, %v2010
        %v2059 = vadd.f32 %v2047, %v2013
        %v2060 = vadd.f32 %v2048, %v2018
        %v2061 = vadd.f32 %v2049, %v2021
        %v2062 = vadd.f32 %v2050, %v2030
        %v2063 = vadd.f32 %v2051, %v2030
        %v2064 = vadd.f32 %v2052, %v2030
        %v2065 = vadd.f32 %v2053, %v2030
        %v2066 = vadd.f32 %v2054, %v2030
        %v2067 = vadd.f32 %v2055, %v2030
        %v2068 = vadd.f32 %v2056, %v2030
        %v2069 = vadd.f32 %v2057, %v2030
        %v2070 = vadd.f32 %v2058, %v2030
        %v2071 = vadd.f32 %v2059, %v2030
        %v2072 = vadd.f32 %v2060, %v2030
        %v2073 = vadd.f32 %v2061, %v2030
        %v2074 = vmax.f32 %v2062, 0.0
        %v2075 = vmax.f32 %v2063, 0.0
        %v2076 = vmax.f32 %v2064, 0.0
        %v2077 = vmax.f32 %v2065, 0.0
        %v2078 = vmax.f32 %v2066, 0.0
        %v2079 = vmax.f32 %v2067, 0.0
        %v2080 = vmax.f32 %v2068, 0.0
        %v2081 = vmax.f32 %v2069, 0.0
        %v2082 = vmax.f32 %v2070, 0.0
        %v2083 = vmax.f32 %v2071, 0.0
        %v2084 = vmax.f32 %v2072, 0.0
        %v2085 = vmax.f32 %v2073, 0.0
        %s2086 = scalar_lea.vmem %s524, 16
        %2087 = vst [vmem:[%s2086] sm:$0xff] %v2074
        %2088 = vst [vmem:[%s2086 + $0x8] sm:$0xff] %v2075
        %2089 = vst [vmem:[%s2086 + $0x10] sm:$0xff] %v2076
        %2090 = vst [vmem:[%s2086 + $0x18] sm:$0xff] %v2077
        %2091 = vst [vmem:[%s2086 + $0x20] sm:$0xff] %v2078
        %2092 = vst [vmem:[%s2086 + $0x28] sm:$0xff] %v2079
        %2093 = vst [vmem:[%s2086 + $0x30] sm:$0xff] %v2080
        %2094 = vst [vmem:[%s2086 + $0x38] sm:$0xff] %v2081
        %2095 = vst [vmem:[%s2086 + $0x40] sm:$0xff] %v2082
        %2096 = vst [vmem:[%s2086 + $0x48] sm:$0xff] %v2083
        %2097 = vst [vmem:[%s2086 + $0x50] sm:$0xff] %v2084
        %2098 = vst [vmem:[%s2086 + $0x58] sm:$0xff] %v2085
        %v2099 = vadd.f32 %v1760, %v1881
        %v2100 = vadd.f32 %v1763, %v1884
        %v2101 = vadd.f32 %v2099, %v2030
        %v2102 = vadd.f32 %v2100, %v2030
        %v2103 = vmax.f32 %v2101, 0.0
        %v2104 = vmax.f32 %v2102, 0.0
        %s2105 = scalar_lea.vmem %s524, 112
        %2106 = vst [vmem:[%s2105] sm:$0xff] %v2103
        %2107 = vst [vmem:[%s2105 + $0x8] sm:$0xff] %v2104
        %v2108 = vld [vmem:[%s7] sm:$0xf]
        %v2109 = vld [vmem:[%s7 + $0x4] sm:$0xf]
        %v2110 = vld [vmem:[%s7 + $0x8] sm:$0xf]
        %v2111 = vld [vmem:[%s7 + $0xc] sm:$0xf]
        %v2112 = vld [vmem:[%s7 + $0x10] sm:$0xf]
        %v2113 = vld [vmem:[%s7 + $0x14] sm:$0xf]
        %v2114 = vld [vmem:[%s7 + $0x18] sm:$0xf]
        %v2115 = vld [vmem:[%s7 + $0x1c] sm:$0xf]
        %v2116 = vld [vmem:[%s7 + $0x20] sm:$0xf]
        %v2117 = vld [vmem:[%s7 + $0x24] sm:$0xf]
        %v2118 = vld [vmem:[%s7 + $0x28] sm:$0xf]
        %v2119 = vld [vmem:[%s7 + $0x2c] sm:$0xf]
        %v2120 = vld [vmem:[%s7 + $0x30] sm:$0xf]
        %v2121 = vld [vmem:[%s7 + $0x34] sm:$0xf]
        %v2122 = vld [vmem:[%s7 + $0x38] sm:$0xf]
        %v2123 = vld [vmem:[%s7 + $0x3c] sm:$0xf]
        %v2124 = vld [vmem:[%s8] sm:$0x1]
        %v2125 = vmax.bf16 %v537, %v539
        %v2126 = vmax.bf16 %v538, %v540
        %v2127 = vmax.bf16 %v539, %v541
        %v2128 = vmax.bf16 %v540, %v542
        %v2129 = vmax.bf16 %v541, %v543
        %v2130 = vmax.bf16 %v542, %v544
        %v2131 = vmax.bf16 %v543, %v545
        %v2132 = vmax.bf16 %v544, %v546
        %v2133 = vmax.bf16 %v545, %v547
        %v2134 = vmax.bf16 %v546, %v548
        %v2135 = vmax.bf16 %v547, %v549
        %v2136 = vmax.bf16 %v548, %v550
        %v2137 = vmax.bf16 %v549, %v551
        %v2138 = vmax.bf16 %v550, %v552
        %v2139 = vmax.bf16 %v2125, 0
        %v2140 = vmax.bf16 %v2126, 0
        %v2143 = vunpack.c.l.b16 %v2139
        %v2144 = vunpack.c.l.b16 %v2140
        %v2145 = vpack.c.b16 %v2144, %v2143
        %v2163 = vunpack.c.l.b16 %v2108
        %v2164 = vunpack.c.l.b16 %v2109
        %v2165 = vunpack.c.l.b16 %v2110
        %v2166 = vunpack.c.l.b16 %v2111
        %v2167 = vunpack.c.l.b16 %v2112
        %v2168 = vunpack.c.l.b16 %v2113
        %v2169 = vunpack.c.l.b16 %v2114
        %v2170 = vunpack.c.l.b16 %v2115
        %v2171 = vunpack.c.l.b16 %v2116
        %v2172 = vunpack.c.l.b16 %v2117
        %v2173 = vunpack.c.l.b16 %v2118
        %v2174 = vunpack.c.l.b16 %v2119
        %v2175 = vunpack.c.l.b16 %v2120
        %v2176 = vunpack.c.l.b16 %v2121
        %v2177 = vunpack.c.l.b16 %v2122
        %v2178 = vunpack.c.l.b16 %v2123
        %v2179 = vpack.c.b16 %v2164, %v2163
        %v2180 = vpack.c.b16 %v2166, %v2165
        %v2181 = vpack.c.b16 %v2168, %v2167
        %v2182 = vpack.c.b16 %v2170, %v2169
        %v2183 = vpack.c.b16 %v2172, %v2171
        %v2184 = vpack.c.b16 %v2174, %v2173
        %v2185 = vpack.c.b16 %v2176, %v2175
        %v2186 = vpack.c.b16 %v2178, %v2177
        %2195 = vmatprep.subr.bf16.mxu0 0
        %2196 = vmatpush1.bf16.msra.mxu0 %v2186
        %2197 = vmatprep.subr.bf16.mxu0 0
        %2198 = vmatpush1.bf16.msra.mxu0 %v2185
        %2199 = vmatprep.subr.bf16.mxu0 0
        %2200 = vmatpush1.bf16.msra.mxu0 %v2184
        %2201 = vmatprep.subr.bf16.mxu0 0
        %2202 = vmatpush1.bf16.msra.mxu0 %v2183
        %2203 = vmatprep.subr.bf16.mxu0 0
        %2204 = vmatpush1.bf16.msra.mxu0 %v2182
        %2205 = vmatprep.subr.bf16.mxu0 0
        %2206 = vmatpush1.bf16.msra.mxu0 %v2181
        %2207 = vmatprep.subr.bf16.mxu0 0
        %2208 = vmatpush1.bf16.msra.mxu0 %v2180
        %2209 = vmatprep.subr.bf16.mxu0 0
        %2210 = vmatpush1.bf16.msra.mxu0 %v2179
        %2211 = vmatprep.subr.bf16.mxu0 0
        %2212 = vmatpush2.bf16.msra.mxu0 0
        %2213 = vmatprep.subr.bf16.mxu0 0
        %2214 = vmatpush2.bf16.msra.mxu0 0
        %2215 = vmatprep.subr.bf16.mxu0 0
        %2216 = vmatpush2.bf16.msra.mxu0 0
        %2217 = vmatprep.subr.bf16.mxu0 0
        %2218 = vmatpush2.bf16.msra.mxu0 0
        %2219 = vmatprep.subr.bf16.mxu0 0
        %2220 = vmatpush2.bf16.msra.mxu0 0
        %2221 = vmatprep.subr.bf16.mxu0 0
        %2222 = vmatpush2.bf16.msra.mxu0 0
        %2223 = vmatprep.subr.bf16.mxu0 0
        %2224 = vmatpush2.bf16.msra.mxu0 0
        %2225 = vmatprep.subr.bf16.mxu0 0
        %2226 = vmatpush2.bf16.msra.mxu0 0
        %2227 = vmatprep.mubr.bf16.mxu0 0
        %2228 = vmatmul.mubr.bf16.gmra.mxu0 %v2145
        %v2229 = vpop.f32.mrf.mxu0
        %v2230 = vadd.f32 0.0, %v2229
        %v2231 = vpop.f32.mrf.mxu0
        %v2232 = vpop.f32.mrf.mxu0
        %v2233 = vadd.f32 0.0, %v2232
        %v2234 = vpop.f32.mrf.mxu0
        %2235 = vdwg.mxu0
        %v2237 = vlaneseq
        %v2238 = vshrl.u32 %v2237, 7
        %v2239 = vsub.s32 0, %v2238
        %v2240 = vrot.slane %v2124, %v2239
        %v2242 = vadd.f32 %v2230, %v2240
        %v2243 = vadd.f32 %v2233, %v2240
        %v2244 = vmax.f32 %v2242, 0.0
        %v2245 = vmax.f32 %v2243, 0.0
        %2246 = vst [vmem:[%s534] sm:$0xff] %v2244
        %2247 = vst [vmem:[%s534 + $0x8] sm:$0xff] %v2245
        %v2248 = vmax.bf16 %v2125, %v2127
        %v2249 = vmax.bf16 %v2126, %v2128
        %v2250 = vmax.bf16 %v2127, %v2129
        %v2251 = vmax.bf16 %v2128, %v2130
        %v2252 = vmax.bf16 %v2129, %v2131
        %v2253 = vmax.bf16 %v2130, %v2132
        %v2254 = vmax.bf16 %v2131, %v2133
        %v2255 = vmax.bf16 %v2132, %v2134
        %v2256 = vmax.bf16 %v2133, %v2135
        %v2257 = vmax.bf16 %v2134, %v2136
        %v2258 = vmax.bf16 %v2135, %v2137
        %v2259 = vmax.bf16 %v2136, %v2138
        %v2272 = vunpack.c.l.b16 %v2248
        %v2273 = vunpack.c.l.b16 %v2249
        %v2274 = vunpack.c.l.b16 %v2250
        %v2275 = vunpack.c.l.b16 %v2251
        %v2276 = vunpack.c.l.b16 %v2252
        %v2277 = vunpack.c.l.b16 %v2253
        %v2278 = vunpack.c.l.b16 %v2254
        %v2279 = vunpack.c.l.b16 %v2255
        %v2280 = vunpack.c.l.b16 %v2256
        %v2281 = vunpack.c.l.b16 %v2257
        %v2282 = vunpack.c.l.b16 %v2258
        %v2283 = vunpack.c.l.b16 %v2259
        %v2284 = vpack.c.b16 %v2273, %v2272
        %v2285 = vpack.c.b16 %v2275, %v2274
        %v2286 = vpack.c.b16 %v2277, %v2276
        %v2287 = vpack.c.b16 %v2279, %v2278
        %v2288 = vpack.c.b16 %v2281, %v2280
        %v2289 = vpack.c.b16 %v2283, %v2282
        %2296 = vmatprep.subr.bf16.mxu0 0
        %2297 = vmatpush1.bf16.msra.mxu0 %v2186
        %2298 = vmatprep.subr.bf16.mxu0 0
        %2299 = vmatpush1.bf16.msra.mxu0 %v2185
        %2300 = vmatprep.subr.bf16.mxu0 0
        %2301 = vmatpush1.bf16.msra.mxu0 %v2184
        %2302 = vmatprep.subr.bf16.mxu0 0
        %2303 = vmatpush1.bf16.msra.mxu0 %v2183
        %2304 = vmatprep.subr.bf16.mxu0 0
        %2305 = vmatpush1.bf16.msra.mxu0 %v2182
        %2306 = vmatprep.subr.bf16.mxu0 0
        %2307 = vmatpush1.bf16.msra.mxu0 %v2181
        %2308 = vmatprep.subr.bf16.mxu0 0
        %2309 = vmatpush1.bf16.msra.mxu0 %v2180
        %2310 = vmatprep.subr.bf16.mxu0 0
        %2311 = vmatpush1.bf16.msra.mxu0 %v2179
        %2312 = vmatprep.subr.bf16.mxu0 0
        %2313 = vmatpush2.bf16.msra.mxu0 0
        %2314 = vmatprep.subr.bf16.mxu0 0
        %2315 = vmatpush2.bf16.msra.mxu0 0
        %2316 = vmatprep.subr.bf16.mxu0 0
        %2317 = vmatpush2.bf16.msra.mxu0 0
        %2318 = vmatprep.subr.bf16.mxu0 0
        %2319 = vmatpush2.bf16.msra.mxu0 0
        %2320 = vmatprep.subr.bf16.mxu0 0
        %2321 = vmatpush2.bf16.msra.mxu0 0
        %2322 = vmatprep.subr.bf16.mxu0 0
        %2323 = vmatpush2.bf16.msra.mxu0 0
        %2324 = vmatprep.subr.bf16.mxu0 0
        %2325 = vmatpush2.bf16.msra.mxu0 0
        %2326 = vmatprep.subr.bf16.mxu0 0
        %2327 = vmatpush2.bf16.msra.mxu0 0
        %2328 = vmatprep.mubr.bf16.mxu0 0
        %2329 = vmatmul.mubr.bf16.gmra.mxu0 %v2284
        %v2330 = vpop.f32.mrf.mxu0
        %v2331 = vadd.f32 0.0, %v2330
        %v2332 = vpop.f32.mrf.mxu0
        %v2333 = vpop.f32.mrf.mxu0
        %v2334 = vadd.f32 0.0, %v2333
        %v2335 = vpop.f32.mrf.mxu0
        %2336 = vmatprep.mubr.bf16.mxu0 0
        %2337 = vmatmul.mubr.bf16.gmra.mxu0 %v2285
        %v2338 = vpop.f32.mrf.mxu0
        %v2339 = vadd.f32 0.0, %v2338
        %v2340 = vpop.f32.mrf.mxu0
        %v2341 = vpop.f32.mrf.mxu0
        %v2342 = vadd.f32 0.0, %v2341
        %v2343 = vpop.f32.mrf.mxu0
        %2344 = vmatprep.mubr.bf16.mxu0 0
        %2345 = vmatmul.mubr.bf16.gmra.mxu0 %v2286
        %v2346 = vpop.f32.mrf.mxu0
        %v2347 = vadd.f32 0.0, %v2346
        %v2348 = vpop.f32.mrf.mxu0
        %v2349 = vpop.f32.mrf.mxu0
        %v2350 = vadd.f32 0.0, %v2349
        %v2351 = vpop.f32.mrf.mxu0
        %2352 = vmatprep.mubr.bf16.mxu0 0
        %2353 = vmatmul.mubr.bf16.gmra.mxu0 %v2287
        %v2354 = vpop.f32.mrf.mxu0
        %v2355 = vadd.f32 0.0, %v2354
        %v2356 = vpop.f32.mrf.mxu0
        %v2357 = vpop.f32.mrf.mxu0
        %v2358 = vadd.f32 0.0, %v2357
        %v2359 = vpop.f32.mrf.mxu0
        %2360 = vmatprep.mubr.bf16.mxu0 0
        %2361 = vmatmul.mubr.bf16.gmra.mxu0 %v2288
        %v2362 = vpop.f32.mrf.mxu0
        %v2363 = vadd.f32 0.0, %v2362
        %v2364 = vpop.f32.mrf.mxu0
        %v2365 = vpop.f32.mrf.mxu0
        %v2366 = vadd.f32 0.0, %v2365
        %v2367 = vpop.f32.mrf.mxu0
        %2368 = vmatprep.mubr.bf16.mxu0 0
        %2369 = vmatmul.mubr.bf16.gmra.mxu0 %v2289
        %v2370 = vpop.f32.mrf.mxu0
        %v2371 = vadd.f32 0.0, %v2370
        %v2372 = vpop.f32.mrf.mxu0
        %v2373 = vpop.f32.mrf.mxu0
        %v2374 = vadd.f32 0.0, %v2373
        %v2375 = vpop.f32.mrf.mxu0
        %2376 = vdwg.mxu0
        %v2377 = vadd.f32 %v2331, %v2240
        %v2378 = vadd.f32 %v2334, %v2240
        %v2379 = vadd.f32 %v2339, %v2240
        %v2380 = vadd.f32 %v2342, %v2240
        %v2381 = vadd.f32 %v2347, %v2240
        %v2382 = vadd.f32 %v2350, %v2240
        %v2383 = vadd.f32 %v2355, %v2240
        %v2384 = vadd.f32 %v2358, %v2240
        %v2385 = vadd.f32 %v2363, %v2240
        %v2386 = vadd.f32 %v2366, %v2240
        %v2387 = vadd.f32 %v2371, %v2240
        %v2388 = vadd.f32 %v2374, %v2240
        %v2389 = vmax.f32 %v2377, 0.0
        %v2390 = vmax.f32 %v2378, 0.0
        %v2391 = vmax.f32 %v2379, 0.0
        %v2392 = vmax.f32 %v2380, 0.0
        %v2393 = vmax.f32 %v2381, 0.0
        %v2394 = vmax.f32 %v2382, 0.0
        %v2395 = vmax.f32 %v2383, 0.0
        %v2396 = vmax.f32 %v2384, 0.0
        %v2397 = vmax.f32 %v2385, 0.0
        %v2398 = vmax.f32 %v2386, 0.0
        %v2399 = vmax.f32 %v2387, 0.0
        %v2400 = vmax.f32 %v2388, 0.0
        %s2401 = scalar_lea.vmem %s534, 16
        %2402 = vst [vmem:[%s2401] sm:$0xff] %v2389
        %2403 = vst [vmem:[%s2401 + $0x8] sm:$0xff] %v2390
        %2404 = vst [vmem:[%s2401 + $0x10] sm:$0xff] %v2391
        %2405 = vst [vmem:[%s2401 + $0x18] sm:$0xff] %v2392
        %2406 = vst [vmem:[%s2401 + $0x20] sm:$0xff] %v2393
        %2407 = vst [vmem:[%s2401 + $0x28] sm:$0xff] %v2394
        %2408 = vst [vmem:[%s2401 + $0x30] sm:$0xff] %v2395
        %2409 = vst [vmem:[%s2401 + $0x38] sm:$0xff] %v2396
        %2410 = vst [vmem:[%s2401 + $0x40] sm:$0xff] %v2397
        %2411 = vst [vmem:[%s2401 + $0x48] sm:$0xff] %v2398
        %2412 = vst [vmem:[%s2401 + $0x50] sm:$0xff] %v2399
        %2413 = vst [vmem:[%s2401 + $0x58] sm:$0xff] %v2400
        %v2414 = vmax.bf16 %v2137, 0
        %v2415 = vmax.bf16 %v2138, 0
        %v2418 = vunpack.c.l.b16 %v2414
        %v2419 = vunpack.c.l.b16 %v2415
        %v2420 = vpack.c.b16 %v2419, %v2418
        %2422 = vmatprep.subr.bf16.mxu0 0
        %2423 = vmatpush1.bf16.msra.mxu0 %v2186
        %2424 = vmatprep.subr.bf16.mxu0 0
        %2425 = vmatpush1.bf16.msra.mxu0 %v2185
        %2426 = vmatprep.subr.bf16.mxu0 0
        %2427 = vmatpush1.bf16.msra.mxu0 %v2184
        %2428 = vmatprep.subr.bf16.mxu0 0
        %2429 = vmatpush1.bf16.msra.mxu0 %v2183
        %2430 = vmatprep.subr.bf16.mxu0 0
        %2431 = vmatpush1.bf16.msra.mxu0 %v2182
        %2432 = vmatprep.subr.bf16.mxu0 0
        %2433 = vmatpush1.bf16.msra.mxu0 %v2181
        %2434 = vmatprep.subr.bf16.mxu0 0
        %2435 = vmatpush1.bf16.msra.mxu0 %v2180
        %2436 = vmatprep.subr.bf16.mxu0 0
        %2437 = vmatpush1.bf16.msra.mxu0 %v2179
        %2438 = vmatprep.subr.bf16.mxu0 0
        %2439 = vmatpush2.bf16.msra.mxu0 0
        %2440 = vmatprep.subr.bf16.mxu0 0
        %2441 = vmatpush2.bf16.msra.mxu0 0
        %2442 = vmatprep.subr.bf16.mxu0 0
        %2443 = vmatpush2.bf16.msra.mxu0 0
        %2444 = vmatprep.subr.bf16.mxu0 0
        %2445 = vmatpush2.bf16.msra.mxu0 0
        %2446 = vmatprep.subr.bf16.mxu0 0
        %2447 = vmatpush2.bf16.msra.mxu0 0
        %2448 = vmatprep.subr.bf16.mxu0 0
        %2449 = vmatpush2.bf16.msra.mxu0 0
        %2450 = vmatprep.subr.bf16.mxu0 0
        %2451 = vmatpush2.bf16.msra.mxu0 0
        %2452 = vmatprep.subr.bf16.mxu0 0
        %2453 = vmatpush2.bf16.msra.mxu0 0
        %2454 = vmatprep.mubr.bf16.mxu0 0
        %2455 = vmatmul.mubr.bf16.gmra.mxu0 %v2420
        %v2456 = vpop.f32.mrf.mxu0
        %v2457 = vadd.f32 0.0, %v2456
        %v2458 = vpop.f32.mrf.mxu0
        %v2459 = vpop.f32.mrf.mxu0
        %v2460 = vadd.f32 0.0, %v2459
        %v2461 = vpop.f32.mrf.mxu0
        %2462 = vdwg.mxu0
        %v2463 = vadd.f32 %v2457, %v2240
        %v2464 = vadd.f32 %v2460, %v2240
        %v2465 = vmax.f32 %v2463, 0.0
        %v2466 = vmax.f32 %v2464, 0.0
        %s2467 = scalar_lea.vmem %s534, 112
        %2468 = vst [vmem:[%s2467] sm:$0xff] %v2465
        %2469 = vst [vmem:[%s2467 + $0x8] sm:$0xff] %v2466
        %s2470 = smul.u32 2, %s30
        %p2471 = scmp.lt.s32.totalorder %s29, 1
        %s2472 = scalar_select %p2471, %s29, 1
        %p2473 = scmp.lt.s32.totalorder %s2470, 1
        %s2474 = scalar_select %p2473, %s2470, 1
        %s2475 = smul.addr %s2472, 16
        %s2476 = sadd.s32 %s2474, %s2475
        %s2477 = smul.addr %s2476, 8
        %s2478 = scalar_lea.vmem %s9, %s2477
        %s2479 = smul.u32 2, %s30
        %p2480 = scmp.lt.s32.totalorder %s29, 1
        %s2481 = scalar_select %p2480, %s29, 1
        %p2482 = scmp.lt.s32.totalorder %s2479, 1
        %s2483 = scalar_select %p2482, %s2479, 1
        %s2484 = smul.addr %s2481, 16
        %s2485 = sadd.s32 %s2483, %s2484
        %s2486 = smul.addr %s2485, 8
        %s2487 = scalar_lea.vmem %s10, %s2486
        %s2488 = smul.u32 2, %s30
        %p2489 = scmp.lt.s32.totalorder %s29, 1
        %s2490 = scalar_select %p2489, %s29, 1
        %p2491 = scmp.lt.s32.totalorder %s2488, 1
        %s2492 = scalar_select %p2491, %s2488, 1
        %s2493 = smul.addr %s2490, 16
        %s2494 = sadd.s32 %s2492, %s2493
        %s2495 = smul.addr %s2494, 8
        %s2496 = scalar_lea.vmem %s11, %s2495
        %s2497 = smul.u32 2, %s30
        %p2498 = scmp.lt.s32.totalorder %s29, 1
        %s2499 = scalar_select %p2498, %s29, 1
        %p2500 = scmp.lt.s32.totalorder %s2497, 1
        %s2501 = scalar_select %p2500, %s2497, 1
        %s2502 = smul.addr %s2499, 16
        %s2503 = sadd.s32 %s2501, %s2502
        %s2504 = smul.addr %s2503, 8
        %s2505 = scalar_lea.vmem %s12, %s2504
        // Predicated region
        $region61: #{_lambda_.1} parent=55 // pred_check
          %p2506 = pneg %p253
        $region62: #{_lambda_.1} parent=55 // pred_check_branch
          %2508 = sbr.rel (%p2506) target = $region64
        $region63: #{_lambda_.1} parent=55 // pred_region
          %s2509 = smul.u32 2, %s30
        $region64: #{_lambda_.1} parent=55 // pred_fallthru
          _
        // Predicated region
        $region65: #{_lambda_.1} parent=55 // pred_check
          %p2510 = pneg %p281
        $region66: #{_lambda_.1} parent=55 // pred_check_branch
          %2512 = sbr.rel (%p2510) target = $region68
        $region67: #{_lambda_.1} parent=55 // pred_region
          %s2513 = smul.u32 2, %s30
        $region68: #{_lambda_.1} parent=55 // pred_fallthru
          _
        // Predicated region
        $region69: #{_lambda_.1} parent=55 // pred_check
          %p2514 = pneg %p309
        $region70: #{_lambda_.1} parent=55 // pred_check_branch
          %2516 = sbr.rel (%p2514) target = $region72
        $region71: #{_lambda_.1} parent=55 // pred_region
          %s2517 = smul.u32 2, %s30
        $region72: #{_lambda_.1} parent=55 // pred_fallthru
          _
        // Predicated region
        $region73: #{_lambda_.1} parent=55 // pred_check
          %p2518 = pneg %p337
        $region74: #{_lambda_.1} parent=55 // pred_check_branch
          %2520 = sbr.rel (%p2518) target = $region76
        $region75: #{_lambda_.1} parent=55 // pred_region
          %s2521 = smul.u32 2, %s30
        $region76: #{_lambda_.1} parent=55 // pred_fallthru
          _
      $region56: #{_lambda_.1} parent=5 // pred_fallthru
        _
      %p2522 = scmp.le.s32.totalorder 2, %s20
      // Predicated region
      $region77: #{_lambda_.1} parent=5 // pred_check
        %p2523 = pneg %p2522
      $region78: #{_lambda_.1} parent=5 // pred_check_branch
        %2525 = sbr.rel (%p2523) target = $region80
      $region79: #{_lambda_.1} parent=5 // pred_region
        %s2526 = ssub.s32 %s20, 2
        // Predicated region
        $region81: #{_lambda_.1} parent=79 // pred_check
          %p2527 = pneg %p259
        $region82: #{_lambda_.1} parent=79 // pred_check_branch
          %2529 = sbr.rel (%p2527) target = $region84
        $region83: #{_lambda_.1} parent=79 // pred_region
          %s2530 = smul.u32 2, %s32
          %p2531 = scmp.lt.s32.totalorder %s31, 1
          %s2532 = scalar_select %p2531, %s31, 1
          %p2533 = scmp.lt.s32.totalorder %s2530, 1
          %s2534 = scalar_select %p2533, %s2530, 1
          %s2535 = smul.addr %s2532, 16
          %s2536 = sadd.s32 %s2534, %s2535
          %s2537 = smul.addr %s2536, 8
          %s2538 = scalar_lea.vmem %s9, %s2537
        $region84: #{_lambda_.1} parent=79 // pred_fallthru
          _
        // Predicated region
        $region85: #{_lambda_.1} parent=79 // pred_check
          %p2539 = pneg %p287
        $region86: #{_lambda_.1} parent=79 // pred_check_branch
          %2541 = sbr.rel (%p2539) target = $region88
        $region87: #{_lambda_.1} parent=79 // pred_region
          %s2542 = smul.u32 2, %s32
          %p2543 = scmp.lt.s32.totalorder %s31, 1
          %s2544 = scalar_select %p2543, %s31, 1
          %p2545 = scmp.lt.s32.totalorder %s2542, 1
          %s2546 = scalar_select %p2545, %s2542, 1
          %s2547 = smul.addr %s2544, 16
          %s2548 = sadd.s32 %s2546, %s2547
          %s2549 = smul.addr %s2548, 8
          %s2550 = scalar_lea.vmem %s10, %s2549
        $region88: #{_lambda_.1} parent=79 // pred_fallthru
          _
        // Predicated region
        $region89: #{_lambda_.1} parent=79 // pred_check
          %p2551 = pneg %p315
        $region90: #{_lambda_.1} parent=79 // pred_check_branch
          %2553 = sbr.rel (%p2551) target = $region92
        $region91: #{_lambda_.1} parent=79 // pred_region
          %s2554 = smul.u32 2, %s32
          %p2555 = scmp.lt.s32.totalorder %s31, 1
          %s2556 = scalar_select %p2555, %s31, 1
          %p2557 = scmp.lt.s32.totalorder %s2554, 1
          %s2558 = scalar_select %p2557, %s2554, 1
          %s2559 = smul.addr %s2556, 16
          %s2560 = sadd.s32 %s2558, %s2559
          %s2561 = smul.addr %s2560, 8
          %s2562 = scalar_lea.vmem %s11, %s2561
        $region92: #{_lambda_.1} parent=79 // pred_fallthru
          _
        // Predicated region
        $region93: #{_lambda_.1} parent=79 // pred_check
          %p2563 = pneg %p343
        $region94: #{_lambda_.1} parent=79 // pred_check_branch
          %2565 = sbr.rel (%p2563) target = $region96
        $region95: #{_lambda_.1} parent=79 // pred_region
          %s2566 = smul.u32 2, %s32
          %p2567 = scmp.lt.s32.totalorder %s31, 1
          %s2568 = scalar_select %p2567, %s31, 1
          %p2569 = scmp.lt.s32.totalorder %s2566, 1
          %s2570 = scalar_select %p2569, %s2566, 1
          %s2571 = smul.addr %s2568, 16
          %s2572 = sadd.s32 %s2570, %s2571
          %s2573 = smul.addr %s2572, 8
          %s2574 = scalar_lea.vmem %s12, %s2573
        $region96: #{_lambda_.1} parent=79 // pred_fallthru
          _
      $region80: #{_lambda_.1} parent=5 // pred_fallthru
        _
    $region6: #{_lambda_.1} parent=1 // loop_footer
      %s24 = sadd.s32 1, %s20
    $region7: #{_lambda_.1} parent=1 // loop_footer_branch
      %19 = sbr.rel target = $region3
    $region8: #{_lambda_.1} parent=1 // loop_exit
      _
    %2575 = vsyncpa [#allocation3], 1
    %s2576 = scalar_lea.sflag [#allocation3], 1
    %2577 = vsyncpa %s2576, 1

</llo_original>
